<compile_context>
chip_gen: v7x
topology: tpu7x:2x2x1
jax: 0.10.0
libtpu: 0.0.40
codegen_flags: <defaults>
</compile_context>

<pallas_src>
import jax
import jax.numpy as jnp
from jax.experimental import pallas as pl
from jax.experimental.pallas import tpu as pltpu

# Problem sizes (small, consistent with an NCHW image input).
B = 2                 # batch
C, HIMG, WIMG = 4, 16, 16
D = C * HIMG * WIMG   # 1024 flattened image features
L = 32                # latent dim
A = 8                 # action dim
HID = 64              # hidden dim of transition-delta MLP

# Lane-aligned packed-bias layout (every segment starts on a 128-lane tile):
#   [ bd (1024) | be (32, pad->128) | bt1 (64, pad->128) | bt2 (32, pad->128) ]
OFF_BD = 0
OFF_BE = D                 # 1024
OFF_BT1 = D + 128          # 1152
OFF_BT2 = D + 256          # 1280
BIAS_TOTAL = D + 384       # 1408

# Lane-aligned packed-output layout:
#   [ x_prime_hat (1024) | z_diff (32, pad->128) | z_prime_hat (32, pad->128) ]
OFF_XHAT = 0
OFF_ZDIFF = D              # 1024
OFF_ZHAT = D + 128         # 1152
OUT_TOTAL = D + 256        # 1280


def transition_kernel(anneal_ref,
                      x_ref, xp_ref, act_ref,
                      we_ref, wt1z_ref, wt1a_ref, wt2_ref, wd_ref, bias_ref,
                      out_ref):
    # Scalar annealing factor derived from (epoch, n_epochs) — lives in SMEM.
    anneal = anneal_ref[0, 0]

    # Unpack the lane-aligned bias buffer (all f32, all slices tile-aligned).
    bd = bias_ref[:, OFF_BD:OFF_BD + D]          # [1, D]
    be = bias_ref[:, OFF_BE:OFF_BE + L]          # [1, L]
    bt1 = bias_ref[:, OFF_BT1:OFF_BT1 + HID]     # [1, HID]
    bt2 = bias_ref[:, OFF_BT2:OFF_BT2 + L]       # [1, L]

    we = we_ref[...]                             # [D, L] bf16 (read once)

    # --- encoder(x) / encoder(x_prime): bf16 MXU pushes, f32 accumulation ---
    z = jnp.tanh(
        jnp.dot(x_ref[...].astype(jnp.bfloat16), we,
                preferred_element_type=jnp.float32) + be
    ) * anneal                                   # [B, L] f32
    z_prime = jnp.tanh(
        jnp.dot(xp_ref[...].astype(jnp.bfloat16), we,
                preferred_element_type=jnp.float32) + be
    ) * anneal                                   # [B, L] f32

    # --- transition_delta(z, action): split dots (no unaligned lane concat) ---
    h = jnp.tanh(
        jnp.dot(z, wt1z_ref[...], preferred_element_type=jnp.float32)
        + jnp.dot(act_ref[...], wt1a_ref[...], preferred_element_type=jnp.float32)
        + bt1
    )                                            # [B, HID] f32
    delta_z = jnp.dot(h, wt2_ref[...], preferred_element_type=jnp.float32) + bt2

    # --- residual latent update ---
    z_prime_hat = z + delta_z                    # [B, L] f32

    # --- decoder(z_prime_hat): bf16 MXU push, f32 accumulation ---
    x_prime_hat = (
        jnp.dot(z_prime_hat.astype(jnp.bfloat16), wd_ref[...],
                preferred_element_type=jnp.float32) + bd
    )                                            # [B, D] f32

    # --- single lane-aligned output slab: one unmasked, lane-dense store ---
    pad = jnp.zeros((B, 128 - L), jnp.float32)
    out_ref[...] = jnp.concatenate(
        [x_prime_hat,                    # lanes [0, 1024)
         z_prime_hat - z_prime, pad,     # lanes [1024, 1152)
         z_prime_hat, pad],              # lanes [1152, 1280)
        axis=-1)


def make_params(key):
    """Reference (f32) parameters of the synthetic sub-modules."""
    ks = jax.random.split(key, 6)
    scale = 0.02
    we = scale * jax.random.normal(ks[0], (D, L), jnp.float32)
    be = jnp.zeros((1, L), jnp.float32)
    wt1z = scale * jax.random.normal(ks[1], (L, HID), jnp.float32)
    wt1a = scale * jax.random.normal(ks[2], (A, HID), jnp.float32)
    bt1 = jnp.zeros((1, HID), jnp.float32)
    wt2 = scale * jax.random.normal(ks[3], (HID, L), jnp.float32)
    bt2 = jnp.zeros((1, L), jnp.float32)
    wd = scale * jax.random.normal(ks[4], (L, D), jnp.float32)
    bd = jnp.zeros((1, D), jnp.float32)
    return (we, be, wt1z, wt1a, bt1, wt2, bt2, wd, bd)


def pack_params(params):
    """One-time packing/casting so repeated forwards re-use packed weights."""
    we, be, wt1z, wt1a, bt1, wt2, bt2, wd, bd = params
    we_bf = we.astype(jnp.bfloat16)                               # [D, L]
    wd_bf = wd.astype(jnp.bfloat16)                               # [L, D]
    pad_l = jnp.zeros((1, 128 - L), jnp.float32)
    pad_h = jnp.zeros((1, 128 - HID), jnp.float32)
    # Lane-aligned bias slab: [ bd | be pad | bt1 pad | bt2 pad ] -> [1, 1408]
    bias_all = jnp.concatenate([bd, be, pad_l, bt1, pad_h, bt2, pad_l], axis=1)
    return (we_bf, wt1z, wt1a, wt2, wd_bf, bias_all)


@jax.jit
def transition_forward(x, action, x_prime, epoch, n_epochs, packed):
    """Returns (z_prime_hat - z_prime, x_prime_hat [NCHW], z_prime_hat)."""
    we_bf, wt1z, wt1a, wt2, wd_bf, bias_all = packed

    # Free views under jit (no extra HBM buffers materialized).
    x_flat = x.reshape(B, D)
    xp_flat = x_prime.reshape(B, D)
    anneal = (jnp.asarray(epoch, jnp.float32)
              / jnp.asarray(n_epochs, jnp.float32)).reshape(1, 1)

    out = pl.pallas_call(
        transition_kernel,
        out_shape=jax.ShapeDtypeStruct((B, OUT_TOTAL), jnp.float32),
        in_specs=[pl.BlockSpec(memory_space=pltpu.SMEM)]          # anneal scalar
                 + [pl.BlockSpec(memory_space=pltpu.VMEM)] * 9,   # acts + params
        out_specs=pl.BlockSpec(memory_space=pltpu.VMEM),
    )(anneal, x_flat, xp_flat, action.astype(jnp.float32),
      we_bf, wt1z, wt1a, wt2, wd_bf, bias_all)

    # Lane-aligned splits (fuse into the same dispatch under jit).
    x_prime_hat = out[:, OFF_XHAT:OFF_XHAT + D].reshape(B, C, HIMG, WIMG)
    z_diff = out[:, OFF_ZDIFF:OFF_ZDIFF + L]
    z_hat = out[:, OFF_ZHAT:OFF_ZHAT + L]
    return z_diff, x_prime_hat, z_hat


if __name__ == "__main__":
    key = jax.random.PRNGKey(0)
    k_x, k_xp, k_a, k_p = jax.random.split(key, 4)

    x = jax.random.normal(k_x, (B, C, HIMG, WIMG), jnp.float32)       # NCHW
    x_prime = jax.random.normal(k_xp, (B, C, HIMG, WIMG), jnp.float32)
    action = jax.random.normal(k_a, (B, A), jnp.float32)
    params = make_params(k_p)
    packed = pack_params(params)

    epoch, n_epochs = 3, 10

    z_diff, x_prime_hat, z_prime_hat = transition_forward(
        x, action, x_prime, epoch, n_epochs, packed)
    jax.block_until_ready((z_diff, x_prime_hat, z_prime_hat))

    assert z_diff.shape == (B, L)
    assert x_prime_hat.shape == (B, C, HIMG, WIMG)
    assert z_prime_hat.shape == (B, L)

    # TODO(synk): the Adam optimizer in __init__ is training-only state and has
    # no forward-pass equivalent; it is intentionally not modeled.
    print("KERNEL_OK")
</pallas_src>

<mosaic_0001>
module attributes {stable_mosaic.version = 11 : i64} {
  func.func @transition_kernel(%arg0: memref<1x1xf32, #tpu.memory_space<smem>>, %arg1: memref<2x1024xf32, #tpu.memory_space<vmem>>, %arg2: memref<2x1024xf32, #tpu.memory_space<vmem>>, %arg3: memref<2x8xf32, #tpu.memory_space<vmem>>, %arg4: memref<1024x32xbf16, #tpu.memory_space<vmem>>, %arg5: memref<32x64xf32, #tpu.memory_space<vmem>>, %arg6: memref<8x64xf32, #tpu.memory_space<vmem>>, %arg7: memref<64x32xf32, #tpu.memory_space<vmem>>, %arg8: memref<32x1024xbf16, #tpu.memory_space<vmem>>, %arg9: memref<1x1408xf32, #tpu.memory_space<vmem>>, %arg10: memref<2x1280xf32, #tpu.memory_space<vmem>>) attributes {dimension_semantics = [], scalar_prefetch = 0 : i64, scratch_operands = 0 : i64, tpu.core_type = #tpu.core_type<tc>} {
    %c0 = arith.constant 0 : index
    %c0_0 = arith.constant 0 : index
    %0 = memref.load %arg0[%c0, %c0_0] : memref<1x1xf32, #tpu.memory_space<smem>>
    %c0_1 = arith.constant 0 : index
    %c0_2 = arith.constant 0 : index
    %1 = vector.load %arg9[%c0_1, %c0_2] : memref<1x1408xf32, #tpu.memory_space<vmem>>, vector<1x1024xf32>
    %c0_3 = arith.constant 0 : index
    %c1024 = arith.constant 1024 : index
    %2 = vector.load %arg9[%c0_3, %c1024] : memref<1x1408xf32, #tpu.memory_space<vmem>>, vector<1x32xf32>
    %c0_4 = arith.constant 0 : index
    %c1152 = arith.constant 1152 : index
    %3 = vector.load %arg9[%c0_4, %c1152] : memref<1x1408xf32, #tpu.memory_space<vmem>>, vector<1x64xf32>
    %c0_5 = arith.constant 0 : index
    %c1280 = arith.constant 1280 : index
    %4 = vector.load %arg9[%c0_5, %c1280] : memref<1x1408xf32, #tpu.memory_space<vmem>>, vector<1x32xf32>
    %c0_6 = arith.constant 0 : index
    %c0_7 = arith.constant 0 : index
    %5 = vector.load %arg4[%c0_6, %c0_7] : memref<1024x32xbf16, #tpu.memory_space<vmem>>, vector<1024x32xbf16>
    %c0_8 = arith.constant 0 : index
    %c0_9 = arith.constant 0 : index
    %6 = vector.load %arg1[%c0_8, %c0_9] : memref<2x1024xf32, #tpu.memory_space<vmem>>, vector<2x1024xf32>
    %7 = arith.truncf %6 : vector<2x1024xf32> to vector<2x1024xbf16>
    %cst = arith.constant dense<0.000000e+00> : vector<2x32xf32>
    %8 = tpu.matmul %7, %5, %cst {dimension_numbers = #tpu.dot_dimension_numbers<[1], [0], [0], [1], [0, 0, 1, 1], [], []>} : vector<2x1024xbf16>, vector<1024x32xbf16>, vector<2x32xf32> -> vector<2x32xf32>
    %9 = vector.broadcast %2 : vector<1x32xf32> to vector<2x32xf32>
    %10 = arith.addf %8, %9 : vector<2x32xf32>
    %11 = math.tanh %10 : vector<2x32xf32>
    %12 = vector.broadcast %0 : f32 to vector<2x32xf32>
    %13 = arith.mulf %11, %12 : vector<2x32xf32>
    %c0_10 = arith.constant 0 : index
    %c0_11 = arith.constant 0 : index
    %14 = vector.load %arg2[%c0_10, %c0_11] : memref<2x1024xf32, #tpu.memory_space<vmem>>, vector<2x1024xf32>
    %15 = arith.truncf %14 : vector<2x1024xf32> to vector<2x1024xbf16>
    %cst_12 = arith.constant dense<0.000000e+00> : vector<2x32xf32>
    %16 = tpu.matmul %15, %5, %cst_12 {dimension_numbers = #tpu.dot_dimension_numbers<[1], [0], [0], [1], [0, 0, 1, 1], [], []>} : vector<2x1024xbf16>, vector<1024x32xbf16>, vector<2x32xf32> -> vector<2x32xf32>
    %17 = vector.broadcast %2 : vector<1x32xf32> to vector<2x32xf32>
    %18 = arith.addf %16, %17 : vector<2x32xf32>
    %19 = math.tanh %18 : vector<2x32xf32>
    %20 = vector.broadcast %0 : f32 to vector<2x32xf32>
    %21 = arith.mulf %19, %20 : vector<2x32xf32>
    %c0_13 = arith.constant 0 : index
    %c0_14 = arith.constant 0 : index
    %22 = vector.load %arg5[%c0_13, %c0_14] : memref<32x64xf32, #tpu.memory_space<vmem>>, vector<32x64xf32>
    %cst_15 = arith.constant dense<0.000000e+00> : vector<2x64xf32>
    %23 = tpu.matmul %13, %22, %cst_15 {dimension_numbers = #tpu.dot_dimension_numbers<[1], [0], [0], [1], [0, 0, 1, 1], [], []>} : vector<2x32xf32>, vector<32x64xf32>, vector<2x64xf32> -> vector<2x64xf32>
    %c0_16 = arith.constant 0 : index
    %c0_17 = arith.constant 0 : index
    %24 = vector.load %arg3[%c0_16, %c0_17] : memref<2x8xf32, #tpu.memory_space<vmem>>, vector<2x8xf32>
    %c0_18 = arith.constant 0 : index
    %c0_19 = arith.constant 0 : index
    %25 = vector.load %arg6[%c0_18, %c0_19] : memref<8x64xf32, #tpu.memory_space<vmem>>, vector<8x64xf32>
    %cst_20 = arith.constant dense<0.000000e+00> : vector<2x64xf32>
    %26 = tpu.matmul %24, %25, %cst_20 {dimension_numbers = #tpu.dot_dimension_numbers<[1], [0], [0], [1], [0, 0, 1, 1], [], []>} : vector<2x8xf32>, vector<8x64xf32>, vector<2x64xf32> -> vector<2x64xf32>
    %27 = arith.addf %23, %26 : vector<2x64xf32>
    %28 = vector.broadcast %3 : vector<1x64xf32> to vector<2x64xf32>
    %29 = arith.addf %27, %28 : vector<2x64xf32>
    %30 = math.tanh %29 : vector<2x64xf32>
    %c0_21 = arith.constant 0 : index
    %c0_22 = arith.constant 0 : index
    %31 = vector.load %arg7[%c0_21, %c0_22] : memref<64x32xf32, #tpu.memory_space<vmem>>, vector<64x32xf32>
    %cst_23 = arith.constant dense<0.000000e+00> : vector<2x32xf32>
    %32 = tpu.matmul %30, %31, %cst_23 {dimension_numbers = #tpu.dot_dimension_numbers<[1], [0], [0], [1], [0, 0, 1, 1], [], []>} : vector<2x64xf32>, vector<64x32xf32>, vector<2x32xf32> -> vector<2x32xf32>
    %33 = vector.broadcast %4 : vector<1x32xf32> to vector<2x32xf32>
    %34 = arith.addf %32, %33 : vector<2x32xf32>
    %35 = arith.addf %13, %34 : vector<2x32xf32>
    %36 = arith.truncf %35 : vector<2x32xf32> to vector<2x32xbf16>
    %c0_24 = arith.constant 0 : index
    %c0_25 = arith.constant 0 : index
    %37 = vector.load %arg8[%c0_24, %c0_25] : memref<32x1024xbf16, #tpu.memory_space<vmem>>, vector<32x1024xbf16>
    %cst_26 = arith.constant dense<0.000000e+00> : vector<2x1024xf32>
    %38 = tpu.matmul %36, %37, %cst_26 {dimension_numbers = #tpu.dot_dimension_numbers<[1], [0], [0], [1], [0, 0, 1, 1], [], []>} : vector<2x32xbf16>, vector<32x1024xbf16>, vector<2x1024xf32> -> vector<2x1024xf32>
    %39 = vector.broadcast %1 : vector<1x1024xf32> to vector<2x1024xf32>
    %40 = arith.addf %38, %39 : vector<2x1024xf32>
    %cst_27 = arith.constant 0.000000e+00 : f32
    %41 = vector.broadcast %cst_27 : f32 to vector<2x96xf32>
    %42 = arith.subf %35, %21 : vector<2x32xf32>
    %43 = tpu.concatenate %40, %42, %41, %35, %41 in 1 : vector<2x1024xf32>, vector<2x32xf32>, vector<2x96xf32>, vector<2x32xf32>, vector<2x96xf32> -> vector<2x1280xf32>
    %c0_28 = arith.constant 0 : index
    %c0_29 = arith.constant 0 : index
    %44 = vector.load %arg10[%c0_28, %c0_29] : memref<2x1280xf32, #tpu.memory_space<vmem>>, vector<2x1280xf32>
    tpu.vector_store %arg10[%c0_28, %c0_29], %43 {strides = array<i32>} : memref<2x1280xf32, #tpu.memory_space<vmem>>, vector<2x1280xf32>,
    return
  }
}

</mosaic_0001>

<llo_original>
// kernel: transition_forward.1
$region0: #{transition_forward.1}
  #allocation0 [shape = 'u32[]', space=smem, size = 0x4, offset = 0x4, fixed_abs, tag = 'smem constant byte address 0x4 - core index']
  #allocation1 [shape = 'u32[144,128]{1,0:T(1,128)}', space=vmem, size = 0x12000, scoped, tag = 'internal scratch']
  #allocation2 [shape = 'f32[1,1]{1,0:T(1,128)S(6)}', space=smem, size = 0x200, scoped, tag = 'scoped memory for transition_forward.1']
  %s0 = inlined_call_operand.<no memory space> [shape: f32[1,1], index: 0, kind: input, shape index: {}]
  %s1 = inlined_call_operand.vmem [shape: f32[2,1024], index: 1, kind: input, shape index: {}]
  %s2 = inlined_call_operand.vmem [shape: f32[2,1024], index: 2, kind: input, shape index: {}]
  %s3 = inlined_call_operand.vmem [shape: f32[2,8], index: 3, kind: input, shape index: {}]
  %s4 = inlined_call_operand.vmem [shape: bf16[1024,32], index: 4, kind: input, shape index: {}]
  %s5 = inlined_call_operand.vmem [shape: f32[32,64], index: 5, kind: input, shape index: {}]
  %s6 = inlined_call_operand.vmem [shape: f32[8,64], index: 6, kind: input, shape index: {}]
  %s7 = inlined_call_operand.vmem [shape: f32[64,32], index: 7, kind: input, shape index: {}]
  %s8 = inlined_call_operand.vmem [shape: bf16[32,1024], index: 8, kind: input, shape index: {}]
  %s9 = inlined_call_operand.vmem [shape: f32[1,1408], index: 9, kind: input, shape index: {}]
  %s10 = inlined_call_operand.vmem [shape: f32[2,1280], index: 10, kind: output, shape index: {}]
  %s11 = sld [smem:[#allocation0]]
  $region50: #{transition_forward.1} parent=0
    _
  %s13 = ssub.s32 1, %s11
  %s14 = scalar_select 0, %s13, %s11
  %15 = sst [smem:[#allocation2]] %s0
  // Predicated region
  $region2: #{transition_forward.1} parent=0 // pred_check
    _
  $region3: #{transition_forward.1} parent=0 // pred_check_branch
    %17 = sbr.rel (0) target = $region5
  $region4: #{transition_forward.1} parent=0 // pred_region
    _
  $region5: #{transition_forward.1} parent=0 // pred_fallthru
    _
  // Predicated region
  $region6: #{transition_forward.1} parent=0 // pred_check
    _
  $region7: #{transition_forward.1} parent=0 // pred_check_branch
    %19 = sbr.rel (0) target = $region9
  $region8: #{transition_forward.1} parent=0 // pred_region
    _
  $region9: #{transition_forward.1} parent=0 // pred_fallthru
    _
  // Predicated region
  $region10: #{transition_forward.1} parent=0 // pred_check
    _
  $region11: #{transition_forward.1} parent=0 // pred_check_branch
    %21 = sbr.rel (0) target = $region13
  $region12: #{transition_forward.1} parent=0 // pred_region
    _
  $region13: #{transition_forward.1} parent=0 // pred_fallthru
    _
  // Predicated region
  $region14: #{transition_forward.1} parent=0 // pred_check
    _
  $region15: #{transition_forward.1} parent=0 // pred_check_branch
    %23 = sbr.rel (0) target = $region17
  $region16: #{transition_forward.1} parent=0 // pred_region
    _
  $region17: #{transition_forward.1} parent=0 // pred_fallthru
    _
  // Predicated region
  $region18: #{transition_forward.1} parent=0 // pred_check
    _
  $region19: #{transition_forward.1} parent=0 // pred_check_branch
    %25 = sbr.rel (0) target = $region21
  $region20: #{transition_forward.1} parent=0 // pred_region
    _
  $region21: #{transition_forward.1} parent=0 // pred_fallthru
    _
  // Predicated region
  $region22: #{transition_forward.1} parent=0 // pred_check
    _
  $region23: #{transition_forward.1} parent=0 // pred_check_branch
    %27 = sbr.rel (0) target = $region25
  $region24: #{transition_forward.1} parent=0 // pred_region
    _
  $region25: #{transition_forward.1} parent=0 // pred_fallthru
    _
  // Predicated region
  $region26: #{transition_forward.1} parent=0 // pred_check
    _
  $region27: #{transition_forward.1} parent=0 // pred_check_branch
    %29 = sbr.rel (0) target = $region29
  $region28: #{transition_forward.1} parent=0 // pred_region
    _
  $region29: #{transition_forward.1} parent=0 // pred_fallthru
    _
  // Predicated region
  $region30: #{transition_forward.1} parent=0 // pred_check
    _
  $region31: #{transition_forward.1} parent=0 // pred_check_branch
    %31 = sbr.rel (0) target = $region33
  $region32: #{transition_forward.1} parent=0 // pred_region
    _
  $region33: #{transition_forward.1} parent=0 // pred_fallthru
    _
  // Predicated region
  $region34: #{transition_forward.1} parent=0 // pred_check
    _
  $region35: #{transition_forward.1} parent=0 // pred_check_branch
    %33 = sbr.rel (0) target = $region37
  $region36: #{transition_forward.1} parent=0 // pred_region
    _
  $region37: #{transition_forward.1} parent=0 // pred_fallthru
    _
  // Predicated region
  $region38: #{transition_forward.1} parent=0 // pred_check
    _
  $region39: #{transition_forward.1} parent=0 // pred_check_branch
    %35 = sbr.rel (0) target = $region41
  $region40: #{transition_forward.1} parent=0 // pred_region
    _
  $region41: #{transition_forward.1} parent=0 // pred_fallthru
    _
  %s37 = sld [smem:[#allocation2]]
  %v38 = vld [vmem:[%s9] sm:$0xff]
  %v39 = vld [vmem:[%s9 + $0x8] sm:$0x1]
  %v40 = vld [vmem:[%s9 + $0x9] sm:$0x1]
  %v41 = vld [vmem:[%s9 + $0xa] sm:$0x1]
  %v42 = vld [vmem:[%s4] sm:$0xf]
  %v43 = vld [vmem:[%s4 + $0x4] sm:$0xf]
  %v44 = vld [vmem:[%s4 + $0x8] sm:$0xf]
  %v45 = vld [vmem:[%s4 + $0xc] sm:$0xf]
  %v46 = vld [vmem:[%s4 + $0x10] sm:$0xf]
  %v47 = vld [vmem:[%s4 + $0x14] sm:$0xf]
  %v48 = vld [vmem:[%s4 + $0x18] sm:$0xf]
  %v49 = vld [vmem:[%s4 + $0x1c] sm:$0xf]
  %v50 = vld [vmem:[%s4 + $0x20] sm:$0xf]
  %v51 = vld [vmem:[%s4 + $0x24] sm:$0xf]
  %v52 = vld [vmem:[%s4 + $0x28] sm:$0xf]
  %v53 = vld [vmem:[%s4 + $0x2c] sm:$0xf]
  %v54 = vld [vmem:[%s4 + $0x30] sm:$0xf]
  %v55 = vld [vmem:[%s4 + $0x34] sm:$0xf]
  %v56 = vld [vmem:[%s4 + $0x38] sm:$0xf]
  %v57 = vld [vmem:[%s4 + $0x3c] sm:$0xf]
  %v58 = vld [vmem:[%s4 + $0x40] sm:$0xf]
  %v59 = vld [vmem:[%s4 + $0x44] sm:$0xf]
  %v60 = vld [vmem:[%s4 + $0x48] sm:$0xf]
  %v61 = vld [vmem:[%s4 + $0x4c] sm:$0xf]
  %v62 = vld [vmem:[%s4 + $0x50] sm:$0xf]
  %v63 = vld [vmem:[%s4 + $0x54] sm:$0xf]
  %v64 = vld [vmem:[%s4 + $0x58] sm:$0xf]
  %v65 = vld [vmem:[%s4 + $0x5c] sm:$0xf]
  %v66 = vld [vmem:[%s4 + $0x60] sm:$0xf]
  %v67 = vld [vmem:[%s4 + $0x64] sm:$0xf]
  %v68 = vld [vmem:[%s4 + $0x68] sm:$0xf]
  %v69 = vld [vmem:[%s4 + $0x6c] sm:$0xf]
  %v70 = vld [vmem:[%s4 + $0x70] sm:$0xf]
  %v71 = vld [vmem:[%s4 + $0x74] sm:$0xf]
  %v72 = vld [vmem:[%s4 + $0x78] sm:$0xf]
  %v73 = vld [vmem:[%s4 + $0x7c] sm:$0xf]
  %v74 = vld [vmem:[%s4 + $0x80] sm:$0xf]
  %v75 = vld [vmem:[%s4 + $0x84] sm:$0xf]
  %v76 = vld [vmem:[%s4 + $0x88] sm:$0xf]
  %v77 = vld [vmem:[%s4 + $0x8c] sm:$0xf]
  %v78 = vld [vmem:[%s4 + $0x90] sm:$0xf]
  %v79 = vld [vmem:[%s4 + $0x94] sm:$0xf]
  %v80 = vld [vmem:[%s4 + $0x98] sm:$0xf]
  %v81 = vld [vmem:[%s4 + $0x9c] sm:$0xf]
  %v82 = vld [vmem:[%s4 + $0xa0] sm:$0xf]
  %v83 = vld [vmem:[%s4 + $0xa4] sm:$0xf]
  %v84 = vld [vmem:[%s4 + $0xa8] sm:$0xf]
  %v85 = vld [vmem:[%s4 + $0xac] sm:$0xf]
  %v86 = vld [vmem:[%s4 + $0xb0] sm:$0xf]
  %v87 = vld [vmem:[%s4 + $0xb4] sm:$0xf]
  %v88 = vld [vmem:[%s4 + $0xb8] sm:$0xf]
  %v89 = vld [vmem:[%s4 + $0xbc] sm:$0xf]
  %v90 = vld [vmem:[%s4 + $0xc0] sm:$0xf]
  %v91 = vld [vmem:[%s4 + $0xc4] sm:$0xf]
  %v92 = vld [vmem:[%s4 + $0xc8] sm:$0xf]
  %v93 = vld [vmem:[%s4 + $0xcc] sm:$0xf]
  %v94 = vld [vmem:[%s4 + $0xd0] sm:$0xf]
  %v95 = vld [vmem:[%s4 + $0xd4] sm:$0xf]
  %v96 = vld [vmem:[%s4 + $0xd8] sm:$0xf]
  %v97 = vld [vmem:[%s4 + $0xdc] sm:$0xf]
  %v98 = vld [vmem:[%s4 + $0xe0] sm:$0xf]
  %v99 = vld [vmem:[%s4 + $0xe4] sm:$0xf]
  %v100 = vld [vmem:[%s4 + $0xe8] sm:$0xf]
  %v101 = vld [vmem:[%s4 + $0xec] sm:$0xf]
  %v102 = vld [vmem:[%s4 + $0xf0] sm:$0xf]
  %v103 = vld [vmem:[%s4 + $0xf4] sm:$0xf]
  %v104 = vld [vmem:[%s4 + $0xf8] sm:$0xf]
  %v105 = vld [vmem:[%s4 + $0xfc] sm:$0xf]
  %v106 = vld [vmem:[%s4 + $0x100] sm:$0xf]
  %v107 = vld [vmem:[%s4 + $0x104] sm:$0xf]
  %v108 = vld [vmem:[%s4 + $0x108] sm:$0xf]
  %v109 = vld [vmem:[%s4 + $0x10c] sm:$0xf]
  %v110 = vld [vmem:[%s4 + $0x110] sm:$0xf]
  %v111 = vld [vmem:[%s4 + $0x114] sm:$0xf]
  %v112 = vld [vmem:[%s4 + $0x118] sm:$0xf]
  %v113 = vld [vmem:[%s4 + $0x11c] sm:$0xf]
  %v114 = vld [vmem:[%s4 + $0x120] sm:$0xf]
  %v115 = vld [vmem:[%s4 + $0x124] sm:$0xf]
  %v116 = vld [vmem:[%s4 + $0x128] sm:$0xf]
  %v117 = vld [vmem:[%s4 + $0x12c] sm:$0xf]
  %v118 = vld [vmem:[%s4 + $0x130] sm:$0xf]
  %v119 = vld [vmem:[%s4 + $0x134] sm:$0xf]
  %v120 = vld [vmem:[%s4 + $0x138] sm:$0xf]
  %v121 = vld [vmem:[%s4 + $0x13c] sm:$0xf]
  %v122 = vld [vmem:[%s4 + $0x140] sm:$0xf]
  %v123 = vld [vmem:[%s4 + $0x144] sm:$0xf]
  %v124 = vld [vmem:[%s4 + $0x148] sm:$0xf]
  %v125 = vld [vmem:[%s4 + $0x14c] sm:$0xf]
  %v126 = vld [vmem:[%s4 + $0x150] sm:$0xf]
  %v127 = vld [vmem:[%s4 + $0x154] sm:$0xf]
  %v128 = vld [vmem:[%s4 + $0x158] sm:$0xf]
  %v129 = vld [vmem:[%s4 + $0x15c] sm:$0xf]
  %v130 = vld [vmem:[%s4 + $0x160] sm:$0xf]
  %v131 = vld [vmem:[%s4 + $0x164] sm:$0xf]
  %v132 = vld [vmem:[%s4 + $0x168] sm:$0xf]
  %v133 = vld [vmem:[%s4 + $0x16c] sm:$0xf]
  %v134 = vld [vmem:[%s4 + $0x170] sm:$0xf]
  %v135 = vld [vmem:[%s4 + $0x174] sm:$0xf]
  %v136 = vld [vmem:[%s4 + $0x178] sm:$0xf]
  %v137 = vld [vmem:[%s4 + $0x17c] sm:$0xf]
  %v138 = vld [vmem:[%s4 + $0x180] sm:$0xf]
  %v139 = vld [vmem:[%s4 + $0x184] sm:$0xf]
  %v140 = vld [vmem:[%s4 + $0x188] sm:$0xf]
  %v141 = vld [vmem:[%s4 + $0x18c] sm:$0xf]
  %v142 = vld [vmem:[%s4 + $0x190] sm:$0xf]
  %v143 = vld [vmem:[%s4 + $0x194] sm:$0xf]
  %v144 = vld [vmem:[%s4 + $0x198] sm:$0xf]
  %v145 = vld [vmem:[%s4 + $0x19c] sm:$0xf]
  %v146 = vld [vmem:[%s4 + $0x1a0] sm:$0xf]
  %v147 = vld [vmem:[%s4 + $0x1a4] sm:$0xf]
  %v148 = vld [vmem:[%s4 + $0x1a8] sm:$0xf]
  %v149 = vld [vmem:[%s4 + $0x1ac] sm:$0xf]
  %v150 = vld [vmem:[%s4 + $0x1b0] sm:$0xf]
  %v151 = vld [vmem:[%s4 + $0x1b4] sm:$0xf]
  %v152 = vld [vmem:[%s4 + $0x1b8] sm:$0xf]
  %v153 = vld [vmem:[%s4 + $0x1bc] sm:$0xf]
  %v154 = vld [vmem:[%s4 + $0x1c0] sm:$0xf]
  %v155 = vld [vmem:[%s4 + $0x1c4] sm:$0xf]
  %v156 = vld [vmem:[%s4 + $0x1c8] sm:$0xf]
  %v157 = vld [vmem:[%s4 + $0x1cc] sm:$0xf]
  %v158 = vld [vmem:[%s4 + $0x1d0] sm:$0xf]
  %v159 = vld [vmem:[%s4 + $0x1d4] sm:$0xf]
  %v160 = vld [vmem:[%s4 + $0x1d8] sm:$0xf]
  %v161 = vld [vmem:[%s4 + $0x1dc] sm:$0xf]
  %v162 = vld [vmem:[%s4 + $0x1e0] sm:$0xf]
  %v163 = vld [vmem:[%s4 + $0x1e4] sm:$0xf]
  %v164 = vld [vmem:[%s4 + $0x1e8] sm:$0xf]
  %v165 = vld [vmem:[%s4 + $0x1ec] sm:$0xf]
  %v166 = vld [vmem:[%s4 + $0x1f0] sm:$0xf]
  %v167 = vld [vmem:[%s4 + $0x1f4] sm:$0xf]
  %v168 = vld [vmem:[%s4 + $0x1f8] sm:$0xf]
  %v169 = vld [vmem:[%s4 + $0x1fc] sm:$0xf]
  %v170 = vld [vmem:[%s1] sm:$0xff]
  %v171 = vld [vmem:[%s1 + $0x8] sm:$0xff]
  %v174 = vcombine.high %v170, %v170
  %v176 = vunpack.c.l.s4 1983009808
  %v177 = vunpack.c.0.s8 %v176
  %v178 = vlaneseq
  %v179 = vshrl.u32 %v178, 7
  %v180 = vsub.s32 %v177, %v179
  %v181 = vrot.slane %v170, %v180
  %v183 = vunpack.c.l.s4 1983009808
  %v184 = vunpack.c.0.s8 %v183
  %v185 = vlaneseq
  %v186 = vshrl.u32 %v185, 7
  %v187 = vsub.s32 %v184, %v186
  %v188 = vrot.slane %v174, %v187
  %v189 = vcombine.high %v181, %v181
  %v190 = vcombine.high %v188, %v188
  %v191 = vcombine.high %v171, %v171
  %v193 = vunpack.c.l.s4 1983009808
  %v194 = vunpack.c.0.s8 %v193
  %v195 = vlaneseq
  %v196 = vshrl.u32 %v195, 7
  %v197 = vsub.s32 %v194, %v196
  %v198 = vrot.slane %v171, %v197
  %v200 = vunpack.c.l.s4 1983009808
  %v201 = vunpack.c.0.s8 %v200
  %v202 = vlaneseq
  %v203 = vshrl.u32 %v202, 7
  %v204 = vsub.s32 %v201, %v203
  %v205 = vrot.slane %v191, %v204
  %v206 = vcombine.high %v198, %v198
  %v207 = vcombine.high %v205, %v205
  %v216 = vpack.c.bf16 %v181, %v181
  %v217 = vpack.c.bf16 %v189, %v189
  %v218 = vpack.c.bf16 %v188, %v188
  %v219 = vpack.c.bf16 %v190, %v190
  %v220 = vpack.c.bf16 %v198, %v198
  %v221 = vpack.c.bf16 %v206, %v206
  %v222 = vpack.c.bf16 %v205, %v205
  %v223 = vpack.c.bf16 %v207, %v207
  %v225 = vlaneseq
  %v226 = vshrl.u32 %v225, 7
  %v227 = vsub.s32 0, %v226
  %v228 = vrot.slane %v39, %v227
  %v358 = vunpack.c.l.b16 %v42
  %v359 = vunpack.c.l.b16 %v43
  %v360 = vunpack.c.l.b16 %v44
  %v361 = vunpack.c.l.b16 %v45
  %v362 = vunpack.c.l.b16 %v46
  %v363 = vunpack.c.l.b16 %v47
  %v364 = vunpack.c.l.b16 %v48
  %v365 = vunpack.c.l.b16 %v49
  %v366 = vunpack.c.l.b16 %v50
  %v367 = vunpack.c.l.b16 %v51
  %v368 = vunpack.c.l.b16 %v52
  %v369 = vunpack.c.l.b16 %v53
  %v370 = vunpack.c.l.b16 %v54
  %v371 = vunpack.c.l.b16 %v55
  %v372 = vunpack.c.l.b16 %v56
  %v373 = vunpack.c.l.b16 %v57
  %v374 = vunpack.c.l.b16 %v58
  %v375 = vunpack.c.l.b16 %v59
  %v376 = vunpack.c.l.b16 %v60
  %v377 = vunpack.c.l.b16 %v61
  %v378 = vunpack.c.l.b16 %v62
  %v379 = vunpack.c.l.b16 %v63
  %v380 = vunpack.c.l.b16 %v64
  %v381 = vunpack.c.l.b16 %v65
  %v382 = vunpack.c.l.b16 %v66
  %v383 = vunpack.c.l.b16 %v67
  %v384 = vunpack.c.l.b16 %v68
  %v385 = vunpack.c.l.b16 %v69
  %v386 = vunpack.c.l.b16 %v70
  %v387 = vunpack.c.l.b16 %v71
  %v388 = vunpack.c.l.b16 %v72
  %v389 = vunpack.c.l.b16 %v73
  %v390 = vunpack.c.l.b16 %v74
  %v391 = vunpack.c.l.b16 %v75
  %v392 = vunpack.c.l.b16 %v76
  %v393 = vunpack.c.l.b16 %v77
  %v394 = vunpack.c.l.b16 %v78
  %v395 = vunpack.c.l.b16 %v79
  %v396 = vunpack.c.l.b16 %v80
  %v397 = vunpack.c.l.b16 %v81
  %v398 = vunpack.c.l.b16 %v82
  %v399 = vunpack.c.l.b16 %v83
  %v400 = vunpack.c.l.b16 %v84
  %v401 = vunpack.c.l.b16 %v85
  %v402 = vunpack.c.l.b16 %v86
  %v403 = vunpack.c.l.b16 %v87
  %v404 = vunpack.c.l.b16 %v88
  %v405 = vunpack.c.l.b16 %v89
  %v406 = vunpack.c.l.b16 %v90
  %v407 = vunpack.c.l.b16 %v91
  %v408 = vunpack.c.l.b16 %v92
  %v409 = vunpack.c.l.b16 %v93
  %v410 = vunpack.c.l.b16 %v94
  %v411 = vunpack.c.l.b16 %v95
  %v412 = vunpack.c.l.b16 %v96
  %v413 = vunpack.c.l.b16 %v97
  %v414 = vunpack.c.l.b16 %v98
  %v415 = vunpack.c.l.b16 %v99
  %v416 = vunpack.c.l.b16 %v100
  %v417 = vunpack.c.l.b16 %v101
  %v418 = vunpack.c.l.b16 %v102
  %v419 = vunpack.c.l.b16 %v103
  %v420 = vunpack.c.l.b16 %v104
  %v421 = vunpack.c.l.b16 %v105
  %v422 = vunpack.c.l.b16 %v106
  %v423 = vunpack.c.l.b16 %v107
  %v424 = vunpack.c.l.b16 %v108
  %v425 = vunpack.c.l.b16 %v109
  %v426 = vunpack.c.l.b16 %v110
  %v427 = vunpack.c.l.b16 %v111
  %v428 = vunpack.c.l.b16 %v112
  %v429 = vunpack.c.l.b16 %v113
  %v430 = vunpack.c.l.b16 %v114
  %v431 = vunpack.c.l.b16 %v115
  %v432 = vunpack.c.l.b16 %v116
  %v433 = vunpack.c.l.b16 %v117
  %v434 = vunpack.c.l.b16 %v118
  %v435 = vunpack.c.l.b16 %v119
  %v436 = vunpack.c.l.b16 %v120
  %v437 = vunpack.c.l.b16 %v121
  %v438 = vunpack.c.l.b16 %v122
  %v439 = vunpack.c.l.b16 %v123
  %v440 = vunpack.c.l.b16 %v124
  %v441 = vunpack.c.l.b16 %v125
  %v442 = vunpack.c.l.b16 %v126
  %v443 = vunpack.c.l.b16 %v127
  %v444 = vunpack.c.l.b16 %v128
  %v445 = vunpack.c.l.b16 %v129
  %v446 = vunpack.c.l.b16 %v130
  %v447 = vunpack.c.l.b16 %v131
  %v448 = vunpack.c.l.b16 %v132
  %v449 = vunpack.c.l.b16 %v133
  %v450 = vunpack.c.l.b16 %v134
  %v451 = vunpack.c.l.b16 %v135
  %v452 = vunpack.c.l.b16 %v136
  %v453 = vunpack.c.l.b16 %v137
  %v454 = vunpack.c.l.b16 %v138
  %v455 = vunpack.c.l.b16 %v139
  %v456 = vunpack.c.l.b16 %v140
  %v457 = vunpack.c.l.b16 %v141
  %v458 = vunpack.c.l.b16 %v142
  %v459 = vunpack.c.l.b16 %v143
  %v460 = vunpack.c.l.b16 %v144
  %v461 = vunpack.c.l.b16 %v145
  %v462 = vunpack.c.l.b16 %v146
  %v463 = vunpack.c.l.b16 %v147
  %v464 = vunpack.c.l.b16 %v148
  %v465 = vunpack.c.l.b16 %v149
  %v466 = vunpack.c.l.b16 %v150
  %v467 = vunpack.c.l.b16 %v151
  %v468 = vunpack.c.l.b16 %v152
  %v469 = vunpack.c.l.b16 %v153
  %v470 = vunpack.c.l.b16 %v154
  %v471 = vunpack.c.l.b16 %v155
  %v472 = vunpack.c.l.b16 %v156
  %v473 = vunpack.c.l.b16 %v157
  %v474 = vunpack.c.l.b16 %v158
  %v475 = vunpack.c.l.b16 %v159
  %v476 = vunpack.c.l.b16 %v160
  %v477 = vunpack.c.l.b16 %v161
  %v478 = vunpack.c.l.b16 %v162
  %v479 = vunpack.c.l.b16 %v163
  %v480 = vunpack.c.l.b16 %v164
  %v481 = vunpack.c.l.b16 %v165
  %v482 = vunpack.c.l.b16 %v166
  %v483 = vunpack.c.l.b16 %v167
  %v484 = vunpack.c.l.b16 %v168
  %v485 = vunpack.c.l.b16 %v169
  %v486 = vpack.c.b16 %v359, %v358
  %v487 = vpack.c.b16 %v361, %v360
  %v488 = vpack.c.b16 %v363, %v362
  %v489 = vpack.c.b16 %v365, %v364
  %v490 = vpack.c.b16 %v367, %v366
  %v491 = vpack.c.b16 %v369, %v368
  %v492 = vpack.c.b16 %v371, %v370
  %v493 = vpack.c.b16 %v373, %v372
  %v494 = vpack.c.b16 %v375, %v374
  %v495 = vpack.c.b16 %v377, %v376
  %v496 = vpack.c.b16 %v379, %v378
  %v497 = vpack.c.b16 %v381, %v380
  %v498 = vpack.c.b16 %v383, %v382
  %v499 = vpack.c.b16 %v385, %v384
  %v500 = vpack.c.b16 %v387, %v386
  %v501 = vpack.c.b16 %v389, %v388
  %v502 = vpack.c.b16 %v391, %v390
  %v503 = vpack.c.b16 %v393, %v392
  %v504 = vpack.c.b16 %v395, %v394
  %v505 = vpack.c.b16 %v397, %v396
  %v506 = vpack.c.b16 %v399, %v398
  %v507 = vpack.c.b16 %v401, %v400
  %v508 = vpack.c.b16 %v403, %v402
  %v509 = vpack.c.b16 %v405, %v404
  %v510 = vpack.c.b16 %v407, %v406
  %v511 = vpack.c.b16 %v409, %v408
  %v512 = vpack.c.b16 %v411, %v410
  %v513 = vpack.c.b16 %v413, %v412
  %v514 = vpack.c.b16 %v415, %v414
  %v515 = vpack.c.b16 %v417, %v416
  %v516 = vpack.c.b16 %v419, %v418
  %v517 = vpack.c.b16 %v421, %v420
  %v518 = vpack.c.b16 %v423, %v422
  %v519 = vpack.c.b16 %v425, %v424
  %v520 = vpack.c.b16 %v427, %v426
  %v521 = vpack.c.b16 %v429, %v428
  %v522 = vpack.c.b16 %v431, %v430
  %v523 = vpack.c.b16 %v433, %v432
  %v524 = vpack.c.b16 %v435, %v434
  %v525 = vpack.c.b16 %v437, %v436
  %v526 = vpack.c.b16 %v439, %v438
  %v527 = vpack.c.b16 %v441, %v440
  %v528 = vpack.c.b16 %v443, %v442
  %v529 = vpack.c.b16 %v445, %v444
  %v530 = vpack.c.b16 %v447, %v446
  %v531 = vpack.c.b16 %v449, %v448
  %v532 = vpack.c.b16 %v451, %v450
  %v533 = vpack.c.b16 %v453, %v452
  %v534 = vpack.c.b16 %v455, %v454
  %v535 = vpack.c.b16 %v457, %v456
  %v536 = vpack.c.b16 %v459, %v458
  %v537 = vpack.c.b16 %v461, %v460
  %v538 = vpack.c.b16 %v463, %v462
  %v539 = vpack.c.b16 %v465, %v464
  %v540 = vpack.c.b16 %v467, %v466
  %v541 = vpack.c.b16 %v469, %v468
  %v542 = vpack.c.b16 %v471, %v470
  %v543 = vpack.c.b16 %v473, %v472
  %v544 = vpack.c.b16 %v475, %v474
  %v545 = vpack.c.b16 %v477, %v476
  %v546 = vpack.c.b16 %v479, %v478
  %v547 = vpack.c.b16 %v481, %v480
  %v548 = vpack.c.b16 %v483, %v482
  %v549 = vpack.c.b16 %v485, %v484
  %614 = vmatprep.subr.bf16.mxu0 0
  %615 = vmatpush1.bf16.msra.mxu0 %v486
  %616 = vmatprep.subr.bf16.mxu0 0
  %617 = vmatpush1.bf16.msra.mxu0 %v487
  %618 = vmatprep.subr.bf16.mxu0 0
  %619 = vmatpush1.bf16.msra.mxu0 %v488
  %620 = vmatprep.subr.bf16.mxu0 0
  %621 = vmatpush1.bf16.msra.mxu0 %v489
  %622 = vmatprep.subr.bf16.mxu0 0
  %623 = vmatpush1.bf16.msra.mxu0 %v490
  %624 = vmatprep.subr.bf16.mxu0 0
  %625 = vmatpush1.bf16.msra.mxu0 %v491
  %626 = vmatprep.subr.bf16.mxu0 0
  %627 = vmatpush1.bf16.msra.mxu0 %v492
  %628 = vmatprep.subr.bf16.mxu0 0
  %629 = vmatpush1.bf16.msra.mxu0 %v493
  %630 = vmatprep.subr.bf16.mxu0 0
  %631 = vmatpush1.bf16.msra.mxu0 %v494
  %632 = vmatprep.subr.bf16.mxu0 0
  %633 = vmatpush1.bf16.msra.mxu0 %v495
  %634 = vmatprep.subr.bf16.mxu0 0
  %635 = vmatpush1.bf16.msra.mxu0 %v496
  %636 = vmatprep.subr.bf16.mxu0 0
  %637 = vmatpush1.bf16.msra.mxu0 %v497
  %638 = vmatprep.subr.bf16.mxu0 0
  %639 = vmatpush1.bf16.msra.mxu0 %v498
  %640 = vmatprep.subr.bf16.mxu0 0
  %641 = vmatpush1.bf16.msra.mxu0 %v499
  %642 = vmatprep.subr.bf16.mxu0 0
  %643 = vmatpush1.bf16.msra.mxu0 %v500
  %644 = vmatprep.subr.bf16.mxu0 0
  %645 = vmatpush1.bf16.msra.mxu0 %v501
  %646 = vmatprep.mubr.bf16.mxu0 %v217
  %647 = vmatmul.mubr.bf16.gmra.mrb[0].mxu0 %v216
  %v648 = vpop.f32.mrb[0].mxu0
  %v649 = vadd.f32 %v228, %v648
  %v650 = vpop.f32.mrb[0].mxu0
  %v651 = vpop.f32.mrb[0].mxu0
  %v652 = vpop.f32.mrb[0].mxu0
  %653 = vdwg.mxu0
  %654 = vmatprep.subr.bf16.mxu0 0
  %655 = vmatpush1.bf16.msra.mxu0 %v502
  %656 = vmatprep.subr.bf16.mxu0 0
  %657 = vmatpush1.bf16.msra.mxu0 %v503
  %658 = vmatprep.subr.bf16.mxu0 0
  %659 = vmatpush1.bf16.msra.mxu0 %v504
  %660 = vmatprep.subr.bf16.mxu0 0
  %661 = vmatpush1.bf16.msra.mxu0 %v505
  %662 = vmatprep.subr.bf16.mxu0 0
  %663 = vmatpush1.bf16.msra.mxu0 %v506
  %664 = vmatprep.subr.bf16.mxu0 0
  %665 = vmatpush1.bf16.msra.mxu0 %v507
  %666 = vmatprep.subr.bf16.mxu0 0
  %667 = vmatpush1.bf16.msra.mxu0 %v508
  %668 = vmatprep.subr.bf16.mxu0 0
  %669 = vmatpush1.bf16.msra.mxu0 %v509
  %670 = vmatprep.subr.bf16.mxu0 0
  %671 = vmatpush1.bf16.msra.mxu0 %v510
  %672 = vmatprep.subr.bf16.mxu0 0
  %673 = vmatpush1.bf16.msra.mxu0 %v511
  %674 = vmatprep.subr.bf16.mxu0 0
  %675 = vmatpush1.bf16.msra.mxu0 %v512
  %676 = vmatprep.subr.bf16.mxu0 0
  %677 = vmatpush1.bf16.msra.mxu0 %v513
  %678 = vmatprep.subr.bf16.mxu0 0
  %679 = vmatpush1.bf16.msra.mxu0 %v514
  %680 = vmatprep.subr.bf16.mxu0 0
  %681 = vmatpush1.bf16.msra.mxu0 %v515
  %682 = vmatprep.subr.bf16.mxu0 0
  %683 = vmatpush1.bf16.msra.mxu0 %v516
  %684 = vmatprep.subr.bf16.mxu0 0
  %685 = vmatpush1.bf16.msra.mxu0 %v517
  %686 = vmatprep.mubr.bf16.mxu0 %v219
  %687 = vmatmul.mubr.bf16.gmra.mrb[0].mxu0 %v218
  %v688 = vpop.f32.mrb[0].mxu0
  %v689 = vadd.f32 %v649, %v688
  %v690 = vpop.f32.mrb[0].mxu0
  %v691 = vpop.f32.mrb[0].mxu0
  %v692 = vpop.f32.mrb[0].mxu0
  %693 = vdwg.mxu0
  %694 = vmatprep.subr.bf16.mxu0 0
  %695 = vmatpush1.bf16.msra.mxu0 %v518
  %696 = vmatprep.subr.bf16.mxu0 0
  %697 = vmatpush1.bf16.msra.mxu0 %v519
  %698 = vmatprep.subr.bf16.mxu0 0
  %699 = vmatpush1.bf16.msra.mxu0 %v520
  %700 = vmatprep.subr.bf16.mxu0 0
  %701 = vmatpush1.bf16.msra.mxu0 %v521
  %702 = vmatprep.subr.bf16.mxu0 0
  %703 = vmatpush1.bf16.msra.mxu0 %v522
  %704 = vmatprep.subr.bf16.mxu0 0
  %705 = vmatpush1.bf16.msra.mxu0 %v523
  %706 = vmatprep.subr.bf16.mxu0 0
  %707 = vmatpush1.bf16.msra.mxu0 %v524
  %708 = vmatprep.subr.bf16.mxu0 0
  %709 = vmatpush1.bf16.msra.mxu0 %v525
  %710 = vmatprep.subr.bf16.mxu0 0
  %711 = vmatpush1.bf16.msra.mxu0 %v526
  %712 = vmatprep.subr.bf16.mxu0 0
  %713 = vmatpush1.bf16.msra.mxu0 %v527
  %714 = vmatprep.subr.bf16.mxu0 0
  %715 = vmatpush1.bf16.msra.mxu0 %v528
  %716 = vmatprep.subr.bf16.mxu0 0
  %717 = vmatpush1.bf16.msra.mxu0 %v529
  %718 = vmatprep.subr.bf16.mxu0 0
  %719 = vmatpush1.bf16.msra.mxu0 %v530
  %720 = vmatprep.subr.bf16.mxu0 0
  %721 = vmatpush1.bf16.msra.mxu0 %v531
  %722 = vmatprep.subr.bf16.mxu0 0
  %723 = vmatpush1.bf16.msra.mxu0 %v532
  %724 = vmatprep.subr.bf16.mxu0 0
  %725 = vmatpush1.bf16.msra.mxu0 %v533
  %726 = vmatprep.mubr.bf16.mxu0 %v221
  %727 = vmatmul.mubr.bf16.gmra.mrb[0].mxu0 %v220
  %v728 = vpop.f32.mrb[0].mxu0
  %v729 = vadd.f32 %v689, %v728
  %v730 = vpop.f32.mrb[0].mxu0
  %v731 = vpop.f32.mrb[0].mxu0
  %v732 = vpop.f32.mrb[0].mxu0
  %733 = vdwg.mxu0
  %734 = vmatprep.subr.bf16.mxu0 0
  %735 = vmatpush1.bf16.msra.mxu0 %v534
  %736 = vmatprep.subr.bf16.mxu0 0
  %737 = vmatpush1.bf16.msra.mxu0 %v535
  %738 = vmatprep.subr.bf16.mxu0 0
  %739 = vmatpush1.bf16.msra.mxu0 %v536
  %740 = vmatprep.subr.bf16.mxu0 0
  %741 = vmatpush1.bf16.msra.mxu0 %v537
  %742 = vmatprep.subr.bf16.mxu0 0
  %743 = vmatpush1.bf16.msra.mxu0 %v538
  %744 = vmatprep.subr.bf16.mxu0 0
  %745 = vmatpush1.bf16.msra.mxu0 %v539
  %746 = vmatprep.subr.bf16.mxu0 0
  %747 = vmatpush1.bf16.msra.mxu0 %v540
  %748 = vmatprep.subr.bf16.mxu0 0
  %749 = vmatpush1.bf16.msra.mxu0 %v541
  %750 = vmatprep.subr.bf16.mxu0 0
  %751 = vmatpush1.bf16.msra.mxu0 %v542
  %752 = vmatprep.subr.bf16.mxu0 0
  %753 = vmatpush1.bf16.msra.mxu0 %v543
  %754 = vmatprep.subr.bf16.mxu0 0
  %755 = vmatpush1.bf16.msra.mxu0 %v544
  %756 = vmatprep.subr.bf16.mxu0 0
  %757 = vmatpush1.bf16.msra.mxu0 %v545
  %758 = vmatprep.subr.bf16.mxu0 0
  %759 = vmatpush1.bf16.msra.mxu0 %v546
  %760 = vmatprep.subr.bf16.mxu0 0
  %761 = vmatpush1.bf16.msra.mxu0 %v547
  %762 = vmatprep.subr.bf16.mxu0 0
  %763 = vmatpush1.bf16.msra.mxu0 %v548
  %764 = vmatprep.subr.bf16.mxu0 0
  %765 = vmatpush1.bf16.msra.mxu0 %v549
  %766 = vmatprep.mubr.bf16.mxu0 %v223
  %767 = vmatmul.mubr.bf16.gmra.mrb[0].mxu0 %v222
  %v768 = vpop.f32.mrb[0].mxu0
  %v769 = vadd.f32 %v729, %v768
  %v770 = vpop.f32.mrb[0].mxu0
  %v771 = vpop.f32.mrb[0].mxu0
  %v772 = vpop.f32.mrb[0].mxu0
  %773 = vdwg.mxu0
  %v774 = vtanh.pop %v769
  %v775 = vstv %s37
  %v776 = vmul.f32 %v774, %v775
  %v777 = vld [vmem:[%s2] sm:$0xff]
  %v778 = vld [vmem:[%s2 + $0x8] sm:$0xff]
  %v781 = vcombine.high %v777, %v777
  %v783 = vunpack.c.l.s4 1983009808
  %v784 = vunpack.c.0.s8 %v783
  %v785 = vlaneseq
  %v786 = vshrl.u32 %v785, 7
  %v787 = vsub.s32 %v784, %v786
  %v788 = vrot.slane %v777, %v787
  %v790 = vunpack.c.l.s4 1983009808
  %v791 = vunpack.c.0.s8 %v790
  %v792 = vlaneseq
  %v793 = vshrl.u32 %v792, 7
  %v794 = vsub.s32 %v791, %v793
  %v795 = vrot.slane %v781, %v794
  %v796 = vcombine.high %v788, %v788
  %v797 = vcombine.high %v795, %v795
  %v798 = vcombine.high %v778, %v778
  %v800 = vunpack.c.l.s4 1983009808
  %v801 = vunpack.c.0.s8 %v800
  %v802 = vlaneseq
  %v803 = vshrl.u32 %v802, 7
  %v804 = vsub.s32 %v801, %v803
  %v805 = vrot.slane %v778, %v804
  %v807 = vunpack.c.l.s4 1983009808
  %v808 = vunpack.c.0.s8 %v807
  %v809 = vlaneseq
  %v810 = vshrl.u32 %v809, 7
  %v811 = vsub.s32 %v808, %v810
  %v812 = vrot.slane %v798, %v811
  %v813 = vcombine.high %v805, %v805
  %v814 = vcombine.high %v812, %v812
  %v823 = vpack.c.bf16 %v788, %v788
  %v824 = vpack.c.bf16 %v796, %v796
  %v825 = vpack.c.bf16 %v795, %v795
  %v826 = vpack.c.bf16 %v797, %v797
  %v827 = vpack.c.bf16 %v805, %v805
  %v828 = vpack.c.bf16 %v813, %v813
  %v829 = vpack.c.bf16 %v812, %v812
  %v830 = vpack.c.bf16 %v814, %v814
  %831 = vmatprep.subr.bf16.mxu0 0
  %832 = vmatpush1.bf16.msra.mxu0 %v486
  %833 = vmatprep.subr.bf16.mxu0 0
  %834 = vmatpush1.bf16.msra.mxu0 %v487
  %835 = vmatprep.subr.bf16.mxu0 0
  %836 = vmatpush1.bf16.msra.mxu0 %v488
  %837 = vmatprep.subr.bf16.mxu0 0
  %838 = vmatpush1.bf16.msra.mxu0 %v489
  %839 = vmatprep.subr.bf16.mxu0 0
  %840 = vmatpush1.bf16.msra.mxu0 %v490
  %841 = vmatprep.subr.bf16.mxu0 0
  %842 = vmatpush1.bf16.msra.mxu0 %v491
  %843 = vmatprep.subr.bf16.mxu0 0
  %844 = vmatpush1.bf16.msra.mxu0 %v492
  %845 = vmatprep.subr.bf16.mxu0 0
  %846 = vmatpush1.bf16.msra.mxu0 %v493
  %847 = vmatprep.subr.bf16.mxu0 0
  %848 = vmatpush1.bf16.msra.mxu0 %v494
  %849 = vmatprep.subr.bf16.mxu0 0
  %850 = vmatpush1.bf16.msra.mxu0 %v495
  %851 = vmatprep.subr.bf16.mxu0 0
  %852 = vmatpush1.bf16.msra.mxu0 %v496
  %853 = vmatprep.subr.bf16.mxu0 0
  %854 = vmatpush1.bf16.msra.mxu0 %v497
  %855 = vmatprep.subr.bf16.mxu0 0
  %856 = vmatpush1.bf16.msra.mxu0 %v498
  %857 = vmatprep.subr.bf16.mxu0 0
  %858 = vmatpush1.bf16.msra.mxu0 %v499
  %859 = vmatprep.subr.bf16.mxu0 0
  %860 = vmatpush1.bf16.msra.mxu0 %v500
  %861 = vmatprep.subr.bf16.mxu0 0
  %862 = vmatpush1.bf16.msra.mxu0 %v501
  %863 = vmatprep.mubr.bf16.mxu0 %v824
  %864 = vmatmul.mubr.bf16.gmra.mrb[0].mxu0 %v823
  %v865 = vpop.f32.mrb[0].mxu0
  %v866 = vadd.f32 %v228, %v865
  %v867 = vpop.f32.mrb[0].mxu0
  %v868 = vpop.f32.mrb[0].mxu0
  %v869 = vpop.f32.mrb[0].mxu0
  %870 = vdwg.mxu0
  %871 = vmatprep.subr.bf16.mxu0 0
  %872 = vmatpush1.bf16.msra.mxu0 %v502
  %873 = vmatprep.subr.bf16.mxu0 0
  %874 = vmatpush1.bf16.msra.mxu0 %v503
  %875 = vmatprep.subr.bf16.mxu0 0
  %876 = vmatpush1.bf16.msra.mxu0 %v504
  %877 = vmatprep.subr.bf16.mxu0 0
  %878 = vmatpush1.bf16.msra.mxu0 %v505
  %879 = vmatprep.subr.bf16.mxu0 0
  %880 = vmatpush1.bf16.msra.mxu0 %v506
  %881 = vmatprep.subr.bf16.mxu0 0
  %882 = vmatpush1.bf16.msra.mxu0 %v507
  %883 = vmatprep.subr.bf16.mxu0 0
  %884 = vmatpush1.bf16.msra.mxu0 %v508
  %885 = vmatprep.subr.bf16.mxu0 0
  %886 = vmatpush1.bf16.msra.mxu0 %v509
  %887 = vmatprep.subr.bf16.mxu0 0
  %888 = vmatpush1.bf16.msra.mxu0 %v510
  %889 = vmatprep.subr.bf16.mxu0 0
  %890 = vmatpush1.bf16.msra.mxu0 %v511
  %891 = vmatprep.subr.bf16.mxu0 0
  %892 = vmatpush1.bf16.msra.mxu0 %v512
  %893 = vmatprep.subr.bf16.mxu0 0
  %894 = vmatpush1.bf16.msra.mxu0 %v513
  %895 = vmatprep.subr.bf16.mxu0 0
  %896 = vmatpush1.bf16.msra.mxu0 %v514
  %897 = vmatprep.subr.bf16.mxu0 0
  %898 = vmatpush1.bf16.msra.mxu0 %v515
  %899 = vmatprep.subr.bf16.mxu0 0
  %900 = vmatpush1.bf16.msra.mxu0 %v516
  %901 = vmatprep.subr.bf16.mxu0 0
  %902 = vmatpush1.bf16.msra.mxu0 %v517
  %903 = vmatprep.mubr.bf16.mxu0 %v826
  %904 = vmatmul.mubr.bf16.gmra.mrb[0].mxu0 %v825
  %v905 = vpop.f32.mrb[0].mxu0
  %v906 = vadd.f32 %v866, %v905
  %v907 = vpop.f32.mrb[0].mxu0
  %v908 = vpop.f32.mrb[0].mxu0
  %v909 = vpop.f32.mrb[0].mxu0
  %910 = vdwg.mxu0
  %911 = vmatprep.subr.bf16.mxu0 0
  %912 = vmatpush1.bf16.msra.mxu0 %v518
  %913 = vmatprep.subr.bf16.mxu0 0
  %914 = vmatpush1.bf16.msra.mxu0 %v519
  %915 = vmatprep.subr.bf16.mxu0 0
  %916 = vmatpush1.bf16.msra.mxu0 %v520
  %917 = vmatprep.subr.bf16.mxu0 0
  %918 = vmatpush1.bf16.msra.mxu0 %v521
  %919 = vmatprep.subr.bf16.mxu0 0
  %920 = vmatpush1.bf16.msra.mxu0 %v522
  %921 = vmatprep.subr.bf16.mxu0 0
  %922 = vmatpush1.bf16.msra.mxu0 %v523
  %923 = vmatprep.subr.bf16.mxu0 0
  %924 = vmatpush1.bf16.msra.mxu0 %v524
  %925 = vmatprep.subr.bf16.mxu0 0
  %926 = vmatpush1.bf16.msra.mxu0 %v525
  %927 = vmatprep.subr.bf16.mxu0 0
  %928 = vmatpush1.bf16.msra.mxu0 %v526
  %929 = vmatprep.subr.bf16.mxu0 0
  %930 = vmatpush1.bf16.msra.mxu0 %v527
  %931 = vmatprep.subr.bf16.mxu0 0
  %932 = vmatpush1.bf16.msra.mxu0 %v528
  %933 = vmatprep.subr.bf16.mxu0 0
  %934 = vmatpush1.bf16.msra.mxu0 %v529
  %935 = vmatprep.subr.bf16.mxu0 0
  %936 = vmatpush1.bf16.msra.mxu0 %v530
  %937 = vmatprep.subr.bf16.mxu0 0
  %938 = vmatpush1.bf16.msra.mxu0 %v531
  %939 = vmatprep.subr.bf16.mxu0 0
  %940 = vmatpush1.bf16.msra.mxu0 %v532
  %941 = vmatprep.subr.bf16.mxu0 0
  %942 = vmatpush1.bf16.msra.mxu0 %v533
  %943 = vmatprep.mubr.bf16.mxu0 %v828
  %944 = vmatmul.mubr.bf16.gmra.mrb[0].mxu0 %v827
  %v945 = vpop.f32.mrb[0].mxu0
  %v946 = vadd.f32 %v906, %v945
  %v947 = vpop.f32.mrb[0].mxu0
  %v948 = vpop.f32.mrb[0].mxu0
  %v949 = vpop.f32.mrb[0].mxu0
  %950 = vdwg.mxu0
  %951 = vmatprep.subr.bf16.mxu0 0
  %952 = vmatpush1.bf16.msra.mxu0 %v534
  %953 = vmatprep.subr.bf16.mxu0 0
  %954 = vmatpush1.bf16.msra.mxu0 %v535
  %955 = vmatprep.subr.bf16.mxu0 0
  %956 = vmatpush1.bf16.msra.mxu0 %v536
  %957 = vmatprep.subr.bf16.mxu0 0
  %958 = vmatpush1.bf16.msra.mxu0 %v537
  %959 = vmatprep.subr.bf16.mxu0 0
  %960 = vmatpush1.bf16.msra.mxu0 %v538
  %961 = vmatprep.subr.bf16.mxu0 0
  %962 = vmatpush1.bf16.msra.mxu0 %v539
  %963 = vmatprep.subr.bf16.mxu0 0
  %964 = vmatpush1.bf16.msra.mxu0 %v540
  %965 = vmatprep.subr.bf16.mxu0 0
  %966 = vmatpush1.bf16.msra.mxu0 %v541
  %967 = vmatprep.subr.bf16.mxu0 0
  %968 = vmatpush1.bf16.msra.mxu0 %v542
  %969 = vmatprep.subr.bf16.mxu0 0
  %970 = vmatpush1.bf16.msra.mxu0 %v543
  %971 = vmatprep.subr.bf16.mxu0 0
  %972 = vmatpush1.bf16.msra.mxu0 %v544
  %973 = vmatprep.subr.bf16.mxu0 0
  %974 = vmatpush1.bf16.msra.mxu0 %v545
  %975 = vmatprep.subr.bf16.mxu0 0
  %976 = vmatpush1.bf16.msra.mxu0 %v546
  %977 = vmatprep.subr.bf16.mxu0 0
  %978 = vmatpush1.bf16.msra.mxu0 %v547
  %979 = vmatprep.subr.bf16.mxu0 0
  %980 = vmatpush1.bf16.msra.mxu0 %v548
  %981 = vmatprep.subr.bf16.mxu0 0
  %982 = vmatpush1.bf16.msra.mxu0 %v549
  %983 = vmatprep.mubr.bf16.mxu0 %v830
  %984 = vmatmul.mubr.bf16.gmra.mrb[0].mxu0 %v829
  %v985 = vpop.f32.mrb[0].mxu0
  %v986 = vadd.f32 %v946, %v985
  %v987 = vpop.f32.mrb[0].mxu0
  %v988 = vpop.f32.mrb[0].mxu0
  %v989 = vpop.f32.mrb[0].mxu0
  %990 = vdwg.mxu0
  %v991 = vtanh.pop %v986
  %v992 = vmul.f32 %v991, %v775
  %v993 = vld [vmem:[%s5] sm:$0xff]
  %v994 = vld [vmem:[%s5 + $0x8] sm:$0xff]
  %v995 = vld [vmem:[%s5 + $0x10] sm:$0xff]
  %v996 = vld [vmem:[%s5 + $0x18] sm:$0xff]
  %v997 = vld [vmem:[%s3] sm:$0x3]
  %v998 = vld [vmem:[%s6] sm:$0xff]
  %vm999 = vcmask 64512
  %v1001 = vsel %vm999, %v997, 0
  %1003 = vmatprep.subr.mxu0 0.0
  %1004 = vmatpush1.msra.mxu0 %v998
  %1005 = vmatprep.subr.mxu0 0.0
  %1006 = vmatpush1.msra.mxu0 0.0
  %1007 = vmatprep.subr.mxu0 0.0
  %1008 = vmatpush1.msra.mxu0 0.0
  %1009 = vmatprep.subr.mxu0 0.0
  %1010 = vmatpush1.msra.mxu0 0.0
  %1011 = vmatprep.subr.mxu0 0.0
  %1012 = vmatpush1.msra.mxu0 0.0
  %1013 = vmatprep.subr.mxu0 0.0
  %1014 = vmatpush1.msra.mxu0 0.0
  %1015 = vmatprep.subr.mxu0 0.0
  %1016 = vmatpush1.msra.mxu0 0.0
  %1017 = vmatprep.subr.mxu0 0.0
  %1018 = vmatpush1.msra.mxu0 0.0
  %1019 = vmatprep.subr.mxu0 0.0
  %1020 = vmatpush1.msra.mxu0 0.0
  %1021 = vmatprep.subr.mxu0 0.0
  %1022 = vmatpush1.msra.mxu0 0.0
  %1023 = vmatprep.subr.mxu0 0.0
  %1024 = vmatpush1.msra.mxu0 0.0
  %1025 = vmatprep.subr.mxu0 0.0
  %1026 = vmatpush1.msra.mxu0 0.0
  %1027 = vmatprep.subr.mxu0 0.0
  %1028 = vmatpush1.msra.mxu0 0.0
  %1029 = vmatprep.subr.mxu0 0.0
  %1030 = vmatpush1.msra.mxu0 0.0
  %1031 = vmatprep.subr.mxu0 0.0
  %1032 = vmatpush1.msra.mxu0 0.0
  %1033 = vmatprep.subr.mxu0 0.0
  %1034 = vmatpush1.msra.mxu0 0.0
  %1035 = vmatprep.subr.mxu0 0.0
  %1036 = vmatpush1.msra.mxu0 0.0
  %1037 = vmatprep.subr.mxu0 0.0
  %1038 = vmatpush1.msra.mxu0 0.0
  %1039 = vmatprep.subr.mxu0 0.0
  %1040 = vmatpush1.msra.mxu0 0.0
  %1041 = vmatprep.subr.mxu0 0.0
  %1042 = vmatpush1.msra.mxu0 0.0
  %1043 = vmatprep.subr.mxu0 0.0
  %1044 = vmatpush1.msra.mxu0 0.0
  %1045 = vmatprep.subr.mxu0 0.0
  %1046 = vmatpush1.msra.mxu0 0.0
  %1047 = vmatprep.subr.mxu0 0.0
  %1048 = vmatpush1.msra.mxu0 0.0
  %1049 = vmatprep.subr.mxu0 0.0
  %1050 = vmatpush1.msra.mxu0 0.0
  %1051 = vmatprep.subr.mxu0 0.0
  %1052 = vmatpush1.msra.mxu0 0.0
  %1053 = vmatprep.subr.mxu0 0.0
  %1054 = vmatpush1.msra.mxu0 0.0
  %1055 = vmatprep.subr.mxu0 0.0
  %1056 = vmatpush1.msra.mxu0 0.0
  %1057 = vmatprep.subr.mxu0 0.0
  %1058 = vmatpush1.msra.mxu0 0.0
  %1059 = vmatprep.subr.mxu0 0.0
  %1060 = vmatpush1.msra.mxu0 0.0
  %1061 = vmatprep.subr.mxu0 0.0
  %1062 = vmatpush1.msra.mxu0 0.0
  %1063 = vmatprep.subr.mxu0 0.0
  %1064 = vmatpush1.msra.mxu0 0.0
  %1065 = vmatprep.subr.mxu0 0.0
  %1066 = vmatpush1.msra.mxu0 0.0
  %1067 = vmatprep.mubr.f32.mxu0 0.0
  %1068 = vmatmul.mubr.f32.gmra.mrb[0].mxu0 %v1001
  %v1069 = vpop.f32.mrb[0].mxu0
  %v1070 = vadd.f32 0.0, %v1069
  %v1071 = vpop.f32.mrb[0].mxu0
  %1072 = vdwg.mxu0
  %vm1073 = vcmask 261120
  %v1075 = vsel %vm1073, %v776, 0
  %1077 = vmatprep.subr.mxu0 0.0
  %1078 = vmatpush1.msra.mxu0 %v993
  %1079 = vmatprep.subr.mxu0 0.0
  %1080 = vmatpush1.msra.mxu0 %v994
  %1081 = vmatprep.subr.mxu0 0.0
  %1082 = vmatpush1.msra.mxu0 %v995
  %1083 = vmatprep.subr.mxu0 0.0
  %1084 = vmatpush1.msra.mxu0 %v996
  %1085 = vmatprep.subr.mxu0 0.0
  %1086 = vmatpush1.msra.mxu0 0.0
  %1087 = vmatprep.subr.mxu0 0.0
  %1088 = vmatpush1.msra.mxu0 0.0
  %1089 = vmatprep.subr.mxu0 0.0
  %1090 = vmatpush1.msra.mxu0 0.0
  %1091 = vmatprep.subr.mxu0 0.0
  %1092 = vmatpush1.msra.mxu0 0.0
  %1093 = vmatprep.subr.mxu0 0.0
  %1094 = vmatpush1.msra.mxu0 0.0
  %1095 = vmatprep.subr.mxu0 0.0
  %1096 = vmatpush1.msra.mxu0 0.0
  %1097 = vmatprep.subr.mxu0 0.0
  %1098 = vmatpush1.msra.mxu0 0.0
  %1099 = vmatprep.subr.mxu0 0.0
  %1100 = vmatpush1.msra.mxu0 0.0
  %1101 = vmatprep.subr.mxu0 0.0
  %1102 = vmatpush1.msra.mxu0 0.0
  %1103 = vmatprep.subr.mxu0 0.0
  %1104 = vmatpush1.msra.mxu0 0.0
  %1105 = vmatprep.subr.mxu0 0.0
  %1106 = vmatpush1.msra.mxu0 0.0
  %1107 = vmatprep.subr.mxu0 0.0
  %1108 = vmatpush1.msra.mxu0 0.0
  %1109 = vmatprep.subr.mxu0 0.0
  %1110 = vmatpush1.msra.mxu0 0.0
  %1111 = vmatprep.subr.mxu0 0.0
  %1112 = vmatpush1.msra.mxu0 0.0
  %1113 = vmatprep.subr.mxu0 0.0
  %1114 = vmatpush1.msra.mxu0 0.0
  %1115 = vmatprep.subr.mxu0 0.0
  %1116 = vmatpush1.msra.mxu0 0.0
  %1117 = vmatprep.subr.mxu0 0.0
  %1118 = vmatpush1.msra.mxu0 0.0
  %1119 = vmatprep.subr.mxu0 0.0
  %1120 = vmatpush1.msra.mxu0 0.0
  %1121 = vmatprep.subr.mxu0 0.0
  %1122 = vmatpush1.msra.mxu0 0.0
  %1123 = vmatprep.subr.mxu0 0.0
  %1124 = vmatpush1.msra.mxu0 0.0
  %1125 = vmatprep.subr.mxu0 0.0
  %1126 = vmatpush1.msra.mxu0 0.0
  %1127 = vmatprep.subr.mxu0 0.0
  %1128 = vmatpush1.msra.mxu0 0.0
  %1129 = vmatprep.subr.mxu0 0.0
  %1130 = vmatpush1.msra.mxu0 0.0
  %1131 = vmatprep.subr.mxu0 0.0
  %1132 = vmatpush1.msra.mxu0 0.0
  %1133 = vmatprep.subr.mxu0 0.0
  %1134 = vmatpush1.msra.mxu0 0.0
  %1135 = vmatprep.subr.mxu0 0.0
  %1136 = vmatpush1.msra.mxu0 0.0
  %1137 = vmatprep.subr.mxu0 0.0
  %1138 = vmatpush1.msra.mxu0 0.0
  %1139 = vmatprep.subr.mxu0 0.0
  %1140 = vmatpush1.msra.mxu0 0.0
  %1141 = vmatprep.mubr.f32.mxu0 0.0
  %1142 = vmatmul.mubr.f32.gmra.mrb[0].mxu0 %v1075
  %v1143 = vpop.f32.mrb[0].mxu0
  %v1144 = vadd.f32 %v1070, %v1143
  %v1145 = vpop.f32.mrb[0].mxu0
  %1146 = vdwg.mxu0
  %v1148 = vlaneseq
  %v1149 = vshrl.u32 %v1148, 7
  %v1150 = vsub.s32 0, %v1149
  %v1151 = vrot.slane %v40, %v1150
  %v1153 = vadd.f32 %v1144, %v1151
  %v1154 = vtanh.pop %v1153
  %v1155 = vld [vmem:[%s7] sm:$0xff]
  %v1156 = vld [vmem:[%s7 + $0x8] sm:$0xff]
  %v1157 = vld [vmem:[%s7 + $0x10] sm:$0xff]
  %v1158 = vld [vmem:[%s7 + $0x18] sm:$0xff]
  %v1159 = vld [vmem:[%s7 + $0x20] sm:$0xff]
  %v1160 = vld [vmem:[%s7 + $0x28] sm:$0xff]
  %v1161 = vld [vmem:[%s7 + $0x30] sm:$0xff]
  %v1162 = vld [vmem:[%s7 + $0x38] sm:$0xff]
  %v1164 = vlaneseq
  %v1165 = vshrl.u32 %v1164, 7
  %v1166 = vsub.s32 0, %v1165
  %v1167 = vrot.slane %v41, %v1166
  %vm1169 = vcmask 523264
  %v1171 = vsel %vm1169, %v1154, 0
  %1173 = vmatprep.subr.mxu0 0.0
  %1174 = vmatpush1.msra.mxu0 %v1155
  %1175 = vmatprep.subr.mxu0 0.0
  %1176 = vmatpush1.msra.mxu0 %v1156
  %1177 = vmatprep.subr.mxu0 0.0
  %1178 = vmatpush1.msra.mxu0 %v1157
  %1179 = vmatprep.subr.mxu0 0.0
  %1180 = vmatpush1.msra.mxu0 %v1158
  %1181 = vmatprep.subr.mxu0 0.0
  %1182 = vmatpush1.msra.mxu0 %v1159
  %1183 = vmatprep.subr.mxu0 0.0
  %1184 = vmatpush1.msra.mxu0 %v1160
  %1185 = vmatprep.subr.mxu0 0.0
  %1186 = vmatpush1.msra.mxu0 %v1161
  %1187 = vmatprep.subr.mxu0 0.0
  %1188 = vmatpush1.msra.mxu0 %v1162
  %1189 = vmatprep.subr.mxu0 0.0
  %1190 = vmatpush1.msra.mxu0 0.0
  %1191 = vmatprep.subr.mxu0 0.0
  %1192 = vmatpush1.msra.mxu0 0.0
  %1193 = vmatprep.subr.mxu0 0.0
  %1194 = vmatpush1.msra.mxu0 0.0
  %1195 = vmatprep.subr.mxu0 0.0
  %1196 = vmatpush1.msra.mxu0 0.0
  %1197 = vmatprep.subr.mxu0 0.0
  %1198 = vmatpush1.msra.mxu0 0.0
  %1199 = vmatprep.subr.mxu0 0.0
  %1200 = vmatpush1.msra.mxu0 0.0
  %1201 = vmatprep.subr.mxu0 0.0
  %1202 = vmatpush1.msra.mxu0 0.0
  %1203 = vmatprep.subr.mxu0 0.0
  %1204 = vmatpush1.msra.mxu0 0.0
  %1205 = vmatprep.subr.mxu0 0.0
  %1206 = vmatpush1.msra.mxu0 0.0
  %1207 = vmatprep.subr.mxu0 0.0
  %1208 = vmatpush1.msra.mxu0 0.0
  %1209 = vmatprep.subr.mxu0 0.0
  %1210 = vmatpush1.msra.mxu0 0.0
  %1211 = vmatprep.subr.mxu0 0.0
  %1212 = vmatpush1.msra.mxu0 0.0
  %1213 = vmatprep.subr.mxu0 0.0
  %1214 = vmatpush1.msra.mxu0 0.0
  %1215 = vmatprep.subr.mxu0 0.0
  %1216 = vmatpush1.msra.mxu0 0.0
  %1217 = vmatprep.subr.mxu0 0.0
  %1218 = vmatpush1.msra.mxu0 0.0
  %1219 = vmatprep.subr.mxu0 0.0
  %1220 = vmatpush1.msra.mxu0 0.0
  %1221 = vmatprep.subr.mxu0 0.0
  %1222 = vmatpush1.msra.mxu0 0.0
  %1223 = vmatprep.subr.mxu0 0.0
  %1224 = vmatpush1.msra.mxu0 0.0
  %1225 = vmatprep.subr.mxu0 0.0
  %1226 = vmatpush1.msra.mxu0 0.0
  %1227 = vmatprep.subr.mxu0 0.0
  %1228 = vmatpush1.msra.mxu0 0.0
  %1229 = vmatprep.subr.mxu0 0.0
  %1230 = vmatpush1.msra.mxu0 0.0
  %1231 = vmatprep.subr.mxu0 0.0
  %1232 = vmatpush1.msra.mxu0 0.0
  %1233 = vmatprep.subr.mxu0 0.0
  %1234 = vmatpush1.msra.mxu0 0.0
  %1235 = vmatprep.subr.mxu0 0.0
  %1236 = vmatpush1.msra.mxu0 0.0
  %1237 = vmatprep.mubr.f32.mxu0 0.0
  %1238 = vmatmul.mubr.f32.gmra.mrb[0].mxu0 %v1171
  %v1239 = vpop.f32.mrb[0].mxu0
  %v1240 = vadd.f32 %v1167, %v1239
  %v1241 = vpop.f32.mrb[0].mxu0
  %1242 = vdwg.mxu0
  %v1243 = vadd.f32 %v776, %v1240
  %v1244 = vpack.c.bf16 %v1243, %v1243
  %v1245 = vld [vmem:[%s8] sm:$0xff]
  %v1246 = vld [vmem:[%s8 + $0x8] sm:$0xff]
  %v1247 = vld [vmem:[%s8 + $0x10] sm:$0xff]
  %v1248 = vld [vmem:[%s8 + $0x18] sm:$0xff]
  %v1249 = vld [vmem:[%s8 + $0x20] sm:$0xff]
  %v1250 = vld [vmem:[%s8 + $0x28] sm:$0xff]
  %v1251 = vld [vmem:[%s8 + $0x30] sm:$0xff]
  %v1252 = vld [vmem:[%s8 + $0x38] sm:$0xff]
  %v1253 = vld [vmem:[%s8 + $0x40] sm:$0xff]
  %v1254 = vld [vmem:[%s8 + $0x48] sm:$0xff]
  %v1255 = vld [vmem:[%s8 + $0x50] sm:$0xff]
  %v1256 = vld [vmem:[%s8 + $0x58] sm:$0xff]
  %v1257 = vld [vmem:[%s8 + $0x60] sm:$0xff]
  %v1258 = vld [vmem:[%s8 + $0x68] sm:$0xff]
  %v1259 = vld [vmem:[%s8 + $0x70] sm:$0xff]
  %v1260 = vld [vmem:[%s8 + $0x78] sm:$0xff]
  %v1262 = vlaneseq
  %v1263 = vshrl.u32 %v1262, 7
  %v1264 = vsub.s32 0, %v1263
  %v1265 = vrot.slane %v38, %v1264
  %v1266 = vlaneseq
  %v1267 = vshrl.u32 %v1266, 7
  %v1268 = vsub.s32 1, %v1267
  %v1269 = vrot.slane %v38, %v1268
  %v1270 = vlaneseq
  %v1271 = vshrl.u32 %v1270, 7
  %v1272 = vsub.s32 2, %v1271
  %v1273 = vrot.slane %v38, %v1272
  %v1274 = vlaneseq
  %v1275 = vshrl.u32 %v1274, 7
  %v1276 = vsub.s32 3, %v1275
  %v1277 = vrot.slane %v38, %v1276
  %v1278 = vlaneseq
  %v1279 = vshrl.u32 %v1278, 7
  %v1280 = vsub.s32 4, %v1279
  %v1281 = vrot.slane %v38, %v1280
  %v1282 = vlaneseq
  %v1283 = vshrl.u32 %v1282, 7
  %v1284 = vsub.s32 5, %v1283
  %v1285 = vrot.slane %v38, %v1284
  %v1286 = vlaneseq
  %v1287 = vshrl.u32 %v1286, 7
  %v1288 = vsub.s32 6, %v1287
  %v1289 = vrot.slane %v38, %v1288
  %v1290 = vlaneseq
  %v1291 = vshrl.u32 %v1290, 7
  %v1292 = vsub.s32 7, %v1291
  %v1293 = vrot.slane %v38, %v1292
  %v1318 = vunpack.c.l.b16 %v1245
  %v1319 = vunpack.c.h.b16 %v1245
  %v1320 = vunpack.c.l.b16 %v1246
  %v1321 = vunpack.c.h.b16 %v1246
  %v1322 = vunpack.c.l.b16 %v1247
  %v1323 = vunpack.c.h.b16 %v1247
  %v1324 = vunpack.c.l.b16 %v1248
  %v1325 = vunpack.c.h.b16 %v1248
  %v1326 = vunpack.c.l.b16 %v1249
  %v1327 = vunpack.c.h.b16 %v1249
  %v1328 = vunpack.c.l.b16 %v1250
  %v1329 = vunpack.c.h.b16 %v1250
  %v1330 = vunpack.c.l.b16 %v1251
  %v1331 = vunpack.c.h.b16 %v1251
  %v1332 = vunpack.c.l.b16 %v1252
  %v1333 = vunpack.c.h.b16 %v1252
  %v1334 = vunpack.c.l.b16 %v1253
  %v1335 = vunpack.c.h.b16 %v1253
  %v1336 = vunpack.c.l.b16 %v1254
  %v1337 = vunpack.c.h.b16 %v1254
  %v1338 = vunpack.c.l.b16 %v1255
  %v1339 = vunpack.c.h.b16 %v1255
  %v1340 = vunpack.c.l.b16 %v1256
  %v1341 = vunpack.c.h.b16 %v1256
  %v1342 = vunpack.c.l.b16 %v1257
  %v1343 = vunpack.c.h.b16 %v1257
  %v1344 = vunpack.c.l.b16 %v1258
  %v1345 = vunpack.c.h.b16 %v1258
  %v1346 = vunpack.c.l.b16 %v1259
  %v1347 = vunpack.c.h.b16 %v1259
  %v1348 = vunpack.c.l.b16 %v1260
  %v1349 = vunpack.c.h.b16 %v1260
  %v1350 = vpack.c.b16 %v1326, %v1318
  %v1351 = vpack.c.b16 %v1327, %v1319
  %v1352 = vpack.c.b16 %v1328, %v1320
  %v1353 = vpack.c.b16 %v1329, %v1321
  %v1354 = vpack.c.b16 %v1330, %v1322
  %v1355 = vpack.c.b16 %v1331, %v1323
  %v1356 = vpack.c.b16 %v1332, %v1324
  %v1357 = vpack.c.b16 %v1333, %v1325
  %v1358 = vpack.c.b16 %v1342, %v1334
  %v1359 = vpack.c.b16 %v1343, %v1335
  %v1360 = vpack.c.b16 %v1344, %v1336
  %v1361 = vpack.c.b16 %v1345, %v1337
  %v1362 = vpack.c.b16 %v1346, %v1338
  %v1363 = vpack.c.b16 %v1347, %v1339
  %v1364 = vpack.c.b16 %v1348, %v1340
  %v1365 = vpack.c.b16 %v1349, %v1341
  %v1383 = vsel %vm1073, %v1244, 0
  %1385 = vmatprep.subr.bf16.mxu0 %v1351
  %1386 = vmatpush1.bf16.msra.mxu0 %v1350
  %1387 = vmatprep.subr.bf16.mxu0 %v1359
  %1388 = vmatpush1.bf16.msra.mxu0 %v1358
  %1389 = vmatprep.subr.bf16.mxu0 0
  %1390 = vmatpush1.bf16.msra.mxu0 0
  %1391 = vmatprep.subr.bf16.mxu0 0
  %1392 = vmatpush1.bf16.msra.mxu0 0
  %1393 = vmatprep.subr.bf16.mxu0 0
  %1394 = vmatpush1.bf16.msra.mxu0 0
  %1395 = vmatprep.subr.bf16.mxu0 0
  %1396 = vmatpush1.bf16.msra.mxu0 0
  %1397 = vmatprep.subr.bf16.mxu0 0
  %1398 = vmatpush1.bf16.msra.mxu0 0
  %1399 = vmatprep.subr.bf16.mxu0 0
  %1400 = vmatpush1.bf16.msra.mxu0 0
  %1401 = vmatprep.subr.bf16.mxu0 0
  %1402 = vmatpush1.bf16.msra.mxu0 0
  %1403 = vmatprep.subr.bf16.mxu0 0
  %1404 = vmatpush1.bf16.msra.mxu0 0
  %1405 = vmatprep.subr.bf16.mxu0 0
  %1406 = vmatpush1.bf16.msra.mxu0 0
  %1407 = vmatprep.subr.bf16.mxu0 0
  %1408 = vmatpush1.bf16.msra.mxu0 0
  %1409 = vmatprep.subr.bf16.mxu0 0
  %1410 = vmatpush1.bf16.msra.mxu0 0
  %1411 = vmatprep.subr.bf16.mxu0 0
  %1412 = vmatpush1.bf16.msra.mxu0 0
  %1413 = vmatprep.subr.bf16.mxu0 0
  %1414 = vmatpush1.bf16.msra.mxu0 0
  %1415 = vmatprep.subr.bf16.mxu0 0
  %1416 = vmatpush1.bf16.msra.mxu0 0
  %1417 = vmatprep.mubr.bf16.mxu0 0
  %1418 = vmatmul.mubr.bf16.gmra.mrb[0].mxu0 %v1383
  %v1419 = vpop.f32.mrb[0].mxu0
  %v1420 = vadd.f32 %v1265, %v1419
  %v1421 = vpop.f32.mrb[0].mxu0
  %v1422 = vadd.f32 %v1269, %v1421
  %v1423 = vpop.f32.mrb[0].mxu0
  %v1424 = vpop.f32.mrb[0].mxu0
  %1425 = vdwg.mxu0
  %1426 = vmatprep.subr.bf16.mxu0 %v1353
  %1427 = vmatpush1.bf16.msra.mxu0 %v1352
  %1428 = vmatprep.subr.bf16.mxu0 %v1361
  %1429 = vmatpush1.bf16.msra.mxu0 %v1360
  %1430 = vmatprep.subr.bf16.mxu0 0
  %1431 = vmatpush1.bf16.msra.mxu0 0
  %1432 = vmatprep.subr.bf16.mxu0 0
  %1433 = vmatpush1.bf16.msra.mxu0 0
  %1434 = vmatprep.subr.bf16.mxu0 0
  %1435 = vmatpush1.bf16.msra.mxu0 0
  %1436 = vmatprep.subr.bf16.mxu0 0
  %1437 = vmatpush1.bf16.msra.mxu0 0
  %1438 = vmatprep.subr.bf16.mxu0 0
  %1439 = vmatpush1.bf16.msra.mxu0 0
  %1440 = vmatprep.subr.bf16.mxu0 0
  %1441 = vmatpush1.bf16.msra.mxu0 0
  %1442 = vmatprep.subr.bf16.mxu0 0
  %1443 = vmatpush1.bf16.msra.mxu0 0
  %1444 = vmatprep.subr.bf16.mxu0 0
  %1445 = vmatpush1.bf16.msra.mxu0 0
  %1446 = vmatprep.subr.bf16.mxu0 0
  %1447 = vmatpush1.bf16.msra.mxu0 0
  %1448 = vmatprep.subr.bf16.mxu0 0
  %1449 = vmatpush1.bf16.msra.mxu0 0
  %1450 = vmatprep.subr.bf16.mxu0 0
  %1451 = vmatpush1.bf16.msra.mxu0 0
  %1452 = vmatprep.subr.bf16.mxu0 0
  %1453 = vmatpush1.bf16.msra.mxu0 0
  %1454 = vmatprep.subr.bf16.mxu0 0
  %1455 = vmatpush1.bf16.msra.mxu0 0
  %1456 = vmatprep.subr.bf16.mxu0 0
  %1457 = vmatpush1.bf16.msra.mxu0 0
  %1458 = vmatprep.mubr.bf16.mxu0 0
  %1459 = vmatmul.mubr.bf16.gmra.mrb[0].mxu0 %v1383
  %v1460 = vpop.f32.mrb[0].mxu0
  %v1461 = vadd.f32 %v1273, %v1460
  %v1462 = vpop.f32.mrb[0].mxu0
  %v1463 = vadd.f32 %v1277, %v1462
  %v1464 = vpop.f32.mrb[0].mxu0
  %v1465 = vpop.f32.mrb[0].mxu0
  %1466 = vdwg.mxu0
  %1467 = vmatprep.subr.bf16.mxu0 %v1355
  %1468 = vmatpush1.bf16.msra.mxu0 %v1354
  %1469 = vmatprep.subr.bf16.mxu0 %v1363
  %1470 = vmatpush1.bf16.msra.mxu0 %v1362
  %1471 = vmatprep.subr.bf16.mxu0 0
  %1472 = vmatpush1.bf16.msra.mxu0 0
  %1473 = vmatprep.subr.bf16.mxu0 0
  %1474 = vmatpush1.bf16.msra.mxu0 0
  %1475 = vmatprep.subr.bf16.mxu0 0
  %1476 = vmatpush1.bf16.msra.mxu0 0
  %1477 = vmatprep.subr.bf16.mxu0 0
  %1478 = vmatpush1.bf16.msra.mxu0 0
  %1479 = vmatprep.subr.bf16.mxu0 0
  %1480 = vmatpush1.bf16.msra.mxu0 0
  %1481 = vmatprep.subr.bf16.mxu0 0
  %1482 = vmatpush1.bf16.msra.mxu0 0
  %1483 = vmatprep.subr.bf16.mxu0 0
  %1484 = vmatpush1.bf16.msra.mxu0 0
  %1485 = vmatprep.subr.bf16.mxu0 0
  %1486 = vmatpush1.bf16.msra.mxu0 0
  %1487 = vmatprep.subr.bf16.mxu0 0
  %1488 = vmatpush1.bf16.msra.mxu0 0
  %1489 = vmatprep.subr.bf16.mxu0 0
  %1490 = vmatpush1.bf16.msra.mxu0 0
  %1491 = vmatprep.subr.bf16.mxu0 0
  %1492 = vmatpush1.bf16.msra.mxu0 0
  %1493 = vmatprep.subr.bf16.mxu0 0
  %1494 = vmatpush1.bf16.msra.mxu0 0
  %1495 = vmatprep.subr.bf16.mxu0 0
  %1496 = vmatpush1.bf16.msra.mxu0 0
  %1497 = vmatprep.subr.bf16.mxu0 0
  %1498 = vmatpush1.bf16.msra.mxu0 0
  %1499 = vmatprep.mubr.bf16.mxu0 0
  %1500 = vmatmul.mubr.bf16.gmra.mrb[0].mxu0 %v1383
  %v1501 = vpop.f32.mrb[0].mxu0
  %v1502 = vadd.f32 %v1281, %v1501
  %v1503 = vpop.f32.mrb[0].mxu0
  %v1504 = vadd.f32 %v1285, %v1503
  %v1505 = vpop.f32.mrb[0].mxu0
  %v1506 = vpop.f32.mrb[0].mxu0
  %1507 = vdwg.mxu0
  %1508 = vmatprep.subr.bf16.mxu0 %v1357
  %1509 = vmatpush1.bf16.msra.mxu0 %v1356
  %1510 = vmatprep.subr.bf16.mxu0 %v1365
  %1511 = vmatpush1.bf16.msra.mxu0 %v1364
  %1512 = vmatprep.subr.bf16.mxu0 0
  %1513 = vmatpush1.bf16.msra.mxu0 0
  %1514 = vmatprep.subr.bf16.mxu0 0
  %1515 = vmatpush1.bf16.msra.mxu0 0
  %1516 = vmatprep.subr.bf16.mxu0 0
  %1517 = vmatpush1.bf16.msra.mxu0 0
  %1518 = vmatprep.subr.bf16.mxu0 0
  %1519 = vmatpush1.bf16.msra.mxu0 0
  %1520 = vmatprep.subr.bf16.mxu0 0
  %1521 = vmatpush1.bf16.msra.mxu0 0
  %1522 = vmatprep.subr.bf16.mxu0 0
  %1523 = vmatpush1.bf16.msra.mxu0 0
  %1524 = vmatprep.subr.bf16.mxu0 0
  %1525 = vmatpush1.bf16.msra.mxu0 0
  %1526 = vmatprep.subr.bf16.mxu0 0
  %1527 = vmatpush1.bf16.msra.mxu0 0
  %1528 = vmatprep.subr.bf16.mxu0 0
  %1529 = vmatpush1.bf16.msra.mxu0 0
  %1530 = vmatprep.subr.bf16.mxu0 0
  %1531 = vmatpush1.bf16.msra.mxu0 0
  %1532 = vmatprep.subr.bf16.mxu0 0
  %1533 = vmatpush1.bf16.msra.mxu0 0
  %1534 = vmatprep.subr.bf16.mxu0 0
  %1535 = vmatpush1.bf16.msra.mxu0 0
  %1536 = vmatprep.subr.bf16.mxu0 0
  %1537 = vmatpush1.bf16.msra.mxu0 0
  %1538 = vmatprep.subr.bf16.mxu0 0
  %1539 = vmatpush1.bf16.msra.mxu0 0
  %1540 = vmatprep.mubr.bf16.mxu0 0
  %1541 = vmatmul.mubr.bf16.gmra.mrb[0].mxu0 %v1383
  %v1542 = vpop.f32.mrb[0].mxu0
  %v1543 = vadd.f32 %v1289, %v1542
  %v1544 = vpop.f32.mrb[0].mxu0
  %v1545 = vadd.f32 %v1293, %v1544
  %v1546 = vpop.f32.mrb[0].mxu0
  %v1547 = vpop.f32.mrb[0].mxu0
  %1548 = vdwg.mxu0
  %v1549 = vsub.f32 %v1243, %v992
  %v1550 = vsel %vm1073, %v1549, 0.0
  %v1551 = vsel %vm1073, %v1243, 0.0
  %v1562 = vcombine.low %v1420, %v1422
  %v1563 = vcombine.low %v1461, %v1463
  %v1565 = vunpack.c.l.s4 1983009808
  %v1566 = vunpack.c.0.s8 %v1565
  %v1567 = vlaneseq
  %v1568 = vshrl.u32 %v1567, 7
  %v1569 = vsub.s32 %v1566, %v1568
  %v1570 = vrot.slane %v1562, %v1569
  %v1572 = vunpack.c.l.s4 1983009808
  %v1573 = vunpack.c.0.s8 %v1572
  %v1574 = vlaneseq
  %v1575 = vshrl.u32 %v1574, 7
  %v1576 = vsub.s32 %v1573, %v1575
  %v1577 = vrot.slane %v1563, %v1576
  %v1578 = vcombine.low %v1570, %v1577
  %v1579 = vcombine.low %v1502, %v1504
  %v1580 = vcombine.low %v1543, %v1545
  %v1582 = vunpack.c.l.s4 1983009808
  %v1583 = vunpack.c.0.s8 %v1582
  %v1584 = vlaneseq
  %v1585 = vshrl.u32 %v1584, 7
  %v1586 = vsub.s32 %v1583, %v1585
  %v1587 = vrot.slane %v1579, %v1586
  %v1589 = vunpack.c.l.s4 1983009808
  %v1590 = vunpack.c.0.s8 %v1589
  %v1591 = vlaneseq
  %v1592 = vshrl.u32 %v1591, 7
  %v1593 = vsub.s32 %v1590, %v1592
  %v1594 = vrot.slane %v1580, %v1593
  %v1595 = vcombine.low %v1587, %v1594
  %v1596 = vcombine.low %v1550, %v1551
  %v1598 = vunpack.c.l.s4 1983009808
  %v1599 = vunpack.c.0.s8 %v1598
  %v1600 = vlaneseq
  %v1601 = vshrl.u32 %v1600, 7
  %v1602 = vsub.s32 %v1599, %v1601
  %v1603 = vrot.slane %v1596, %v1602
  %1607 = vst [vmem:[%s10] sm:$0xff] %v1578
  %1608 = vst [vmem:[%s10 + $0x8] sm:$0xff] %v1595
  %1609 = vst [vmem:[%s10 + $0x10] sm:$0xf] %v1603
  // Predicated region
  $region42: #{transition_forward.1} parent=0 // pred_check
    _
  $region43: #{transition_forward.1} parent=0 // pred_check_branch
    %1611 = sbr.rel (0) target = $region45
  $region44: #{transition_forward.1} parent=0 // pred_region
    _
  $region45: #{transition_forward.1} parent=0 // pred_fallthru
    _
  // Predicated region
  $region46: #{transition_forward.1} parent=0 // pred_check
    _
  $region47: #{transition_forward.1} parent=0 // pred_check_branch
    %1613 = sbr.rel (0) target = $region49
  $region48: #{transition_forward.1} parent=0 // pred_region
    _
  $region49: #{transition_forward.1} parent=0 // pred_fallthru
    _

</llo_original>
